<compile_context>
chip_gen: v5e
topology: v5e:2x2
jax: 0.10.0
libtpu: 0.0.40
codegen_flags: <defaults>
</compile_context>

<pallas_src>
import jax
import jax.numpy as jnp
from jax.experimental import pallas as pl
from jax.experimental.pallas import tpu as pltpu

LAYER_NUM = 3
RESIDENT_RHS_MAX_BYTES = 16 * 1024 * 1024   # raw bf16 ego table; x2 buffering budgeted
VMEM_LIMIT_CAP_BYTES = 64 * 1024 * 1024     # v7x physical VMEM per TensorCore


def _round_up(x, m):
    return ((x + m - 1) // m) * m


def _pick_tiles(n, preferred=512):
    """Largest MXU/HBM-friendly tiles (multiple of 128, <= preferred) dividing n.
    Row tile prefers >= 2 tiles so the 'parallel' axis shards across v7x's 2 TCs
    (inert on single-TC v5e/v6e)."""
    cands = [c for c in (512, 384, 256, 128) if c <= preferred and n % c == 0]
    if not cands:                       # n not a multiple of 128 (shouldn't happen: we pad)
        return n, n
    tk = cands[0]
    tm = next((c for c in cands if n // c >= 2), cands[0])
    return tm, tk


def _gnn_vmem_limit(n, dp, tm, tk, resident_rhs, graph_bufs, first):
    """Scoped-VMEM budget derived from the actual buffer footprint (+headroom)."""
    b = graph_bufs * tm * tk * 2                              # graph bf16 tiles
    b += (2 * n if resident_rhs else 2 * tk) * dp * 2         # rhs bf16 (resident or streamed)
    b += 2 * tm * dp * 4                                      # egorow f32 (double-buffered)
    if not first:
        b += 2 * tm * dp * 4                                  # accin f32
    b += 2 * tm * dp * (4 + 2 + 4)                            # 3 outputs (f32, bf16, f32)
    b += tm * dp * 4                                          # f32 accumulator scratch
    b = int(b * 1.25) + (4 << 20)                             # headroom
    return max(32 << 20, min(b, VMEM_LIMIT_CAP_BYTES))


# ----------------------------------------------------------------------------
# One-shot prologue: L2-normalize embedding rows (f32) and emit the bf16 copy
# fed to the MXU.  Hoisted out of the spmm's inner K loop (review item).
# ----------------------------------------------------------------------------
def _normalize_kernel(x_ref, f32_ref, bf16_ref):
    x = x_ref[...]
    nrm = jnp.sqrt(jnp.sum(x * x, axis=-1, keepdims=True))
    y = x / jnp.maximum(nrm, 1e-12)          # matches F.normalize(eps=1e-12)
    f32_ref[...] = y
    bf16_ref[...] = y.astype(jnp.bfloat16)


def normalize_rows(x_pad, tm):
    n, dp = x_pad.shape
    return pl.pallas_call(
        _normalize_kernel,
        out_shape=(jax.ShapeDtypeStruct((n, dp), jnp.float32),
                   jax.ShapeDtypeStruct((n, dp), jnp.bfloat16)),
        grid_spec=pltpu.PrefetchScalarGridSpec(
            num_scalar_prefetch=0, grid=(n // tm,),
            in_specs=[pl.BlockSpec((tm, dp), lambda i: (i, 0))],
            out_specs=[pl.BlockSpec((tm, dp), lambda i: (i, 0)),
                       pl.BlockSpec((tm, dp), lambda i: (i, 0))]),
        compiler_params=pltpu.CompilerParams(
            dimension_semantics=("parallel",)),
    )(x_pad)


# ----------------------------------------------------------------------------
# GNN propagation layer: agg = G @ ego ; ego' = agg + agg*ego ; acc += ego'
# (the last layer also applies the 1/(L+1) mean and the final F.normalize).
# ----------------------------------------------------------------------------
def _make_layer_kernel(*, first, last, resident_rhs, tk):
    def kernel(graph_ref, rhs_ref, egorow_ref, *rest):
        if first:
            ego_f32_out, ego_bf16_out, acc_out, acc_scr = rest
        else:
            accin_ref, ego_f32_out, ego_bf16_out, acc_out, acc_scr = rest

        k = pl.program_id(1)

        @pl.when(k == 0)
        def _():
            acc_scr[...] = jnp.zeros_like(acc_scr)

        if resident_rhs:
            # Full bf16 ego table is VMEM-resident (loaded once per layer);
            # slice the K chunk with an aligned dynamic sublane offset.
            off = pl.multiple_of(k * tk, tk)
            rhs = rhs_ref[pl.ds(off, tk), :]
        else:
            rhs = rhs_ref[...]

        # bf16 x bf16 MXU matmul, f32 accumulation in VMEM scratch.
        acc_scr[...] += jnp.dot(graph_ref[...], rhs,
                                preferred_element_type=jnp.float32)

        @pl.when(k == pl.num_programs(1) - 1)
        def _():
            ego_prev = egorow_ref[...]
            agg = acc_scr[...]
            ego_new = agg + agg * ego_prev                   # f32 element-wise update
            ego_f32_out[...] = ego_new
            ego_bf16_out[...] = ego_new.astype(jnp.bfloat16)
            base = ego_prev if first else accin_ref[...]
            acc = base + ego_new
            if last:
                acc = acc * (1.0 / (LAYER_NUM + 1))          # mean over the 4 stacked layers
                n2 = jnp.sqrt(jnp.sum(acc * acc, axis=-1, keepdims=True))
                acc = acc / jnp.maximum(n2, 1e-12)           # final F.normalize(dim=-1)
            acc_out[...] = acc
    return kernel


def _propagate_layer(graph_bf16, rhs_bf16, egorow, accin, *, first, last,
                     tm, tk, resident_rhs):
    n, dp = egorow.shape
    grid = (n // tm, n // tk)
    deep = grid[0] * grid[1] >= 3            # 3-deep graph pipelining only when useful

    graph_spec = (pl.BlockSpec((tm, tk), lambda i, k: (i, k),
                               pipeline_mode=pl.Buffered(3)) if deep else
                  pl.BlockSpec((tm, tk), lambda i, k: (i, k)))
    if resident_rhs:
        rhs_spec = pl.BlockSpec((n, dp), lambda i, k: (0, 0))     # loaded once per layer
    else:
        rhs_spec = pl.BlockSpec((tk, dp), lambda i, k: (k, 0))

    in_specs = [graph_spec, rhs_spec,
                pl.BlockSpec((tm, dp), lambda i, k: (i, 0))]      # ego rows (element-wise)
    inputs = [graph_bf16, rhs_bf16, egorow]
    if not first:
        in_specs.append(pl.BlockSpec((tm, dp), lambda i, k: (i, 0)))   # running layer sum
        inputs.append(accin)

    out_specs = [
        pl.BlockSpec((tm, dp), lambda i, k: (i, 0)),   # ego_new (f32)
        pl.BlockSpec((tm, dp), lambda i, k: (i, 0)),   # ego_new (bf16, next layer's MXU rhs)
        pl.BlockSpec((tm, dp), lambda i, k: (i, 0)),   # running layer sum / final output
    ]
    out_shape = (jax.ShapeDtypeStruct((n, dp), jnp.float32),
                 jax.ShapeDtypeStruct((n, dp), jnp.bfloat16),
                 jax.ShapeDtypeStruct((n, dp), jnp.float32))

    vmem_limit = _gnn_vmem_limit(n, dp, tm, tk, resident_rhs,
                                 graph_bufs=3 if deep else 2, first=first)

    return pl.pallas_call(
        _make_layer_kernel(first=first, last=last,
                           resident_rhs=resident_rhs, tk=tk),
        out_shape=out_shape,
        grid_spec=pltpu.PrefetchScalarGridSpec(
            num_scalar_prefetch=0,
            grid=grid,                                   # rows x reduction (K last)
            in_specs=in_specs,
            out_specs=out_specs,
            scratch_shapes=[pltpu.VMEM((tm, dp), jnp.float32)]),
        compiler_params=pltpu.CompilerParams(
            dimension_semantics=("parallel", "arbitrary"),
            vmem_limit_bytes=vmem_limit),
    )(*inputs)


def run_gnn(graph_bf16, x_pad, *, tm=None, tk=None):
    n, dp = x_pad.shape
    assert graph_bf16.shape == (n, n)
    tm_auto, tk_auto = _pick_tiles(n)
    tm = tm or tm_auto
    tk = tk or tk_auto

    # Hoisted prologue: normalize once, emit both f32 (element-wise path) and
    # bf16 (MXU rhs) copies.
    x_f32, x_bf16 = normalize_rows(x_pad, tm)

    resident_rhs = 2 * n * dp * 2 <= 2 * RESIDENT_RHS_MAX_BYTES   # bf16 table (+double buffer)

    ego_f32, ego_bf16, acc = _propagate_layer(
        graph_bf16, x_bf16, x_f32, None, first=True, last=False,
        tm=tm, tk=tk, resident_rhs=resident_rhs)
    for layer in range(1, LAYER_NUM):
        last = layer == LAYER_NUM - 1
        ego_f32, ego_bf16, acc = _propagate_layer(
            graph_bf16, ego_bf16, ego_f32, acc, first=False, last=last,
            tm=tm, tk=tk, resident_rhs=resident_rhs)
    return acc   # last layer wrote the normalized mean here


# ----------------------------------------------------------------------------
# Prediction head: the GNN output table stays in HBM (pl.ANY); the 2*B rows are
# DMA-gathered into VMEM scratch using scalar-prefetched (SMEM) index vectors.
#   mf = ue*ie ; logits = sum(mf * wa_row) + ba
#   h  = relu(ue @ W1u + ie @ W1i + b1) ; mlp = sum(h * w2_row) + b2
#   rating = sigmoid(logits + mlp)
# ----------------------------------------------------------------------------
def _make_head_kernel(batch_pad):
    def kernel(u_rows_ref, i_rows_ref, ui_hbm, wa_ref, ba_ref,
               w1u_ref, w1i_ref, b1_ref, w2_ref, b2_ref, out_ref,
               ue_buf, ie_buf, sem):
        def row_copy(row, dst, s):
            return pltpu.make_async_copy(ui_hbm.at[pl.ds(row, 1), :], dst, s)

        # Issue all 2*B single-row gathers, then wait.  The full table never
        # enters VMEM (important at large N, especially on v7x's 64 MiB VMEM).
        for b in range(batch_pad):
            row_copy(u_rows_ref[b], ue_buf.at[pl.ds(b, 1), :], sem.at[0, b]).start()
            row_copy(i_rows_ref[b], ie_buf.at[pl.ds(b, 1), :], sem.at[1, b]).start()
        for b in range(batch_pad):
            row_copy(u_rows_ref[b], ue_buf.at[pl.ds(b, 1), :], sem.at[0, b]).wait()
            row_copy(i_rows_ref[b], ie_buf.at[pl.ds(b, 1), :], sem.at[1, b]).wait()

        ue = ue_buf[...]
        ie = ie_buf[...]

        mf = ue * ie
        # Width-1 linears as VPU mul + lane reduction (keeps the MXU free).
        logits = jnp.sum(mf * wa_ref[...], axis=-1, keepdims=True) + ba_ref[...]

        # Split-weight form of Linear(2D -> 4D) over cat([ue, ie]) — no concat copy.
        h = (jnp.dot(ue, w1u_ref[...], preferred_element_type=jnp.float32)
             + jnp.dot(ie, w1i_ref[...], preferred_element_type=jnp.float32)
             + b1_ref[...])
        h = jnp.maximum(h, 0.0)
        mlp = jnp.sum(h * w2_ref[...], axis=-1, keepdims=True) + b2_ref[...]

        out_ref[...] = jax.nn.sigmoid(logits + mlp)
    return kernel


def run_head(ui_emb, u_rows, i_rows, wa_row, ba, w1_u, w1_i, b1, w2_row, b2):
    n, dp = ui_emb.shape
    batch = u_rows.shape[0]
    h4 = w1_u.shape[1]

    # Sublane-align the gather batch; padded slots reuse row 0 (valid reads).
    bp = max(8, _round_up(batch, 8))
    if bp != batch:
        u_rows = jnp.pad(u_rows, (0, bp - batch))
        i_rows = jnp.pad(i_rows, (0, bp - batch))

    def full(shape):
        return pl.BlockSpec(shape, lambda i, u, it: (0,) * len(shape))

    out = pl.pallas_call(
        _make_head_kernel(bp),
        out_shape=jax.ShapeDtypeStruct((bp, 1), jnp.float32),
        grid_spec=pltpu.PrefetchScalarGridSpec(
            num_scalar_prefetch=2,              # user rows, item rows (already offset)
            grid=(1,),
            in_specs=[
                pl.BlockSpec(memory_space=pl.ANY),   # GNN output table stays in HBM
                full((1, dp)), full((1, 1)),         # affine_output weight row + bias
                full((dp, h4)), full((dp, h4)),      # mlp_output split into user/item halves
                full((1, h4)),
                full((1, h4)), full((1, 1)),         # mlp_output1 weight row + bias
            ],
            out_specs=full((bp, 1)),
            scratch_shapes=[pltpu.VMEM((bp, dp), jnp.float32),
                            pltpu.VMEM((bp, dp), jnp.float32),
                            pltpu.SemaphoreType.DMA((2, bp))]),
        compiler_params=pltpu.CompilerParams(
            dimension_semantics=("arbitrary",)),
    )(u_rows, i_rows, ui_emb, wa_row, ba, w1_u, w1_i, b1, w2_row, b2)
    return out[:batch]


# ----------------------------------------------------------------------------
# One-time parameter layout prep (mirrors torch __init__-time work):
#   - concatenate + zero-pad the embedding tables to (Np, Dp) multiples of 128
#   - zero-pad + cast the dense normalized adjacency to bf16 (MXU operand)
#   - reshape/split head weights (stored (in, out), i.e. torch weights transposed)
# ----------------------------------------------------------------------------
def prepare_model(params, graph, num_users, latent_dim):
    d = latent_dim
    dp = _round_up(d, 128)
    x = jnp.concatenate([params["emb_user"], params["emb_item"]], axis=0)
    n = x.shape[0]
    np_ = _round_up(n, 128)                                  # pad N: keeps the grid tiled

    x_pad = jnp.pad(x, ((0, np_ - n), (0, dp - d))).astype(jnp.float32)
    graph_pad = jnp.pad(graph, ((0, np_ - n), (0, np_ - n)))

    wa_row = jnp.pad(params["wa"].T, ((0, 0), (0, dp - d)))        # (1, Dp)
    w1_u = jnp.pad(params["w1"][:d], ((0, dp - d), (0, 0)))        # (Dp, 4D)
    w1_i = jnp.pad(params["w1"][d:], ((0, dp - d), (0, 0)))        # (Dp, 4D)
    w2_row = params["w2"].T                                        # (1, 4D)

    return dict(
        graph_bf16=graph_pad.astype(jnp.bfloat16),
        x_pad=x_pad,
        wa_row=wa_row, ba=params["ba"],
        w1_u=w1_u, w1_i=w1_i, b1=params["b1"],
        w2_row=w2_row, b2=params["b2"],
        num_users=num_users)


def lightgcn_forward(model, user_indices, item_indices):
    ui_emb = run_gnn(model["graph_bf16"], model["x_pad"])
    u_rows = user_indices.astype(jnp.int32)
    i_rows = (item_indices + model["num_users"]).astype(jnp.int32)
    return run_head(ui_emb, u_rows, i_rows,
                    model["wa_row"], model["ba"],
                    model["w1_u"], model["w1_i"], model["b1"],
                    model["w2_row"], model["b2"])


# ----------------------------------------------------------------------------
# Pure-JAX reference (same bf16 quantization of the MXU operands, f32 accum).
# ----------------------------------------------------------------------------
def reference_forward(params, graph, user_indices, item_indices, num_users):
    def l2(x):
        nrm = jnp.sqrt(jnp.sum(x * x, axis=-1, keepdims=True))
        return x / jnp.maximum(nrm, 1e-12)

    g16 = graph.astype(jnp.bfloat16)
    x = l2(jnp.concatenate([params["emb_user"], params["emb_item"]], axis=0))
    ego, acc = x, x
    for _ in range(LAYER_NUM):
        agg = jnp.dot(g16, ego.astype(jnp.bfloat16),
                      preferred_element_type=jnp.float32)
        ego = agg + agg * ego
        acc = acc + ego
    out = l2(acc * (1.0 / (LAYER_NUM + 1)))

    ue = out[user_indices]
    ie = out[num_users + item_indices]
    mf = ue * ie
    logits = mf @ params["wa"] + params["ba"]
    cat = jnp.concatenate([ue, ie], axis=-1)
    h = jnp.maximum(cat @ params["w1"] + params["b1"], 0.0)
    mlp = h @ params["w2"] + params["b2"]
    return jax.nn.sigmoid(logits + mlp)


# ----------------------------------------------------------------------------
# Deterministic synthetic parameter / graph construction.
# ----------------------------------------------------------------------------
def build_params_and_graph(key, num_users, num_items, latent_dim):
    keys = jax.random.split(key, 8)
    d = latent_dim

    emb_user = 0.1 * jax.random.normal(keys[0], (num_users, d), jnp.float32)
    emb_item = 0.1 * jax.random.normal(keys[1], (num_items, d), jnp.float32)

    # affine_output: Linear(D,1); mlp_output: Linear(2D,4D); mlp_output1: Linear(4D,1)
    # Weights stored (in, out) — transposed w.r.t. torch.nn.Linear.
    wa = 0.1 * jax.random.normal(keys[2], (d, 1), jnp.float32)
    ba = jnp.zeros((1, 1), jnp.float32)
    w1 = 0.1 * jax.random.normal(keys[3], (2 * d, 4 * d), jnp.float32)
    b1 = jnp.zeros((1, 4 * d), jnp.float32)
    w2 = 0.1 * jax.random.normal(keys[4], (4 * d, 1), jnp.float32)
    b2 = jnp.zeros((1, 1), jnp.float32)

    # Synthetic symmetric-normalized bipartite adjacency (dense), as LightGCN uses.
    R = (jax.random.uniform(keys[5], (num_users, num_items)) < 0.1).astype(jnp.float32)
    n = num_users + num_items
    A = jnp.zeros((n, n), jnp.float32)
    A = A.at[:num_users, num_users:].set(R)
    A = A.at[num_users:, :num_users].set(R.T)
    deg = jnp.sum(A, axis=1)
    d_inv_sqrt = jnp.where(deg > 0, 1.0 / jnp.sqrt(jnp.maximum(deg, 1e-12)), 0.0)
    graph = A * d_inv_sqrt[:, None] * d_inv_sqrt[None, :]

    params = dict(emb_user=emb_user, emb_item=emb_item,
                  wa=wa, ba=ba, w1=w1, b1=b1, w2=w2, b2=b2)
    return params, graph


if __name__ == "__main__":
    # N = 768 -> tm = tk = 384, grid (2, 2): exercises the tiled K-reduction,
    # the resident-rhs slicing, Buffered(3) graph pipelining, and the head's
    # HBM DMA gather — while staying small.
    num_users, num_items, latent_dim = 384, 384, 32
    batch = 8

    key = jax.random.PRNGKey(0)
    kp, ku, ki = jax.random.split(key, 3)
    params, graph = build_params_and_graph(kp, num_users, num_items, latent_dim)

    user_indices = jax.random.randint(ku, (batch,), 0, num_users, jnp.int32)
    item_indices = jax.random.randint(ki, (batch,), 0, num_items, jnp.int32)

    model = prepare_model(params, graph, num_users, latent_dim)
    rating = lightgcn_forward(model, user_indices, item_indices)
    rating = jax.block_until_ready(rating)

    assert rating.shape == (batch, 1)
    assert bool(jnp.all(jnp.isfinite(rating)))

    # Loose sanity check vs a pure-JAX reference that applies the same bf16
    # quantization of the MXU operands (differences are f32 accumulation order).
    ref = jax.block_until_ready(
        reference_forward(params, graph, user_indices, item_indices, num_users))
    assert float(jnp.max(jnp.abs(rating - ref))) < 2e-2

    print("KERNEL_OK")
</pallas_src>

<mosaic_0001>
module attributes {stable_mosaic.version = 11 : i64} {
  func.func @_normalize_kernel(%arg0: i32, %arg1: memref<384x128xf32, #tpu.memory_space<vmem>>, %arg2: memref<384x128xf32, #tpu.memory_space<vmem>>, %arg3: memref<384x128xbf16, #tpu.memory_space<vmem>>) attributes {dimension_semantics = [#tpu.dimension_semantics<parallel>], iteration_bounds = array<i64: 2>, scalar_prefetch = 0 : i64, scratch_operands = 0 : i64, tpu.core_type = #tpu.core_type<tc>, window_params = [{transform_indices = @transform_0, window_bounds = array<i64: 384, 128>}, {transform_indices = @transform_1, window_bounds = array<i64: 384, 128>}, {transform_indices = @transform_2, window_bounds = array<i64: 384, 128>}]} {
    %c0 = arith.constant 0 : index
    %c0_0 = arith.constant 0 : index
    %0 = vector.load %arg1[%c0, %c0_0] : memref<384x128xf32, #tpu.memory_space<vmem>>, vector<384x128xf32>
    %1 = arith.mulf %0, %0 : vector<384x128xf32>
    %cst = arith.constant dense<0.000000e+00> : vector<384xf32>
    %2 = vector.multi_reduction <add>, %1, %cst [1] : vector<384x128xf32> to vector<384xf32>
    %3 = vector.shape_cast %2 : vector<384xf32> to vector<384x1xf32>
    %4 = math.sqrt %3 : vector<384x1xf32>
    %cst_1 = arith.constant 9.99999996E-13 : f32
    %5 = vector.broadcast %cst_1 : f32 to vector<384x1xf32>
    %6 = arith.maximumf %4, %5 : vector<384x1xf32>
    %7 = vector.broadcast %6 : vector<384x1xf32> to vector<384x128xf32>
    %8 = arith.divf %0, %7 : vector<384x128xf32>
    %c0_2 = arith.constant 0 : index
    %c0_3 = arith.constant 0 : index
    %9 = vector.load %arg2[%c0_2, %c0_3] : memref<384x128xf32, #tpu.memory_space<vmem>>, vector<384x128xf32>
    tpu.vector_store %arg2[%c0_2, %c0_3], %8 {strides = array<i32>} : memref<384x128xf32, #tpu.memory_space<vmem>>, vector<384x128xf32>,
    %10 = arith.truncf %8 : vector<384x128xf32> to vector<384x128xbf16>
    %c0_4 = arith.constant 0 : index
    %c0_5 = arith.constant 0 : index
    %11 = vector.load %arg3[%c0_4, %c0_5] : memref<384x128xbf16, #tpu.memory_space<vmem>>, vector<384x128xbf16>
    tpu.vector_store %arg3[%c0_4, %c0_5], %10 {strides = array<i32>} : memref<384x128xbf16, #tpu.memory_space<vmem>>, vector<384x128xbf16>,
    return
  }
  func.func @transform_0(%arg0: i32) -> (i32, i32) {
    %c0_i32 = arith.constant 0 : i32
    %c0_i32_0 = arith.constant 0 : i32
    return %arg0, %c0_i32 : i32, i32
  }
  func.func @transform_1(%arg0: i32) -> (i32, i32) {
    %c0_i32 = arith.constant 0 : i32
    %c0_i32_0 = arith.constant 0 : i32
    return %arg0, %c0_i32 : i32, i32
  }
  func.func @transform_2(%arg0: i32) -> (i32, i32) {
    %c0_i32 = arith.constant 0 : i32
    %c0_i32_0 = arith.constant 0 : i32
    return %arg0, %c0_i32 : i32, i32
  }
}

</mosaic_0001>

<llo_original>
// kernel: tpu_custom_call.1
$region0: #{tpu_custom_call.1}
  #allocation0 [shape = 'u32[]', space=smem, size = 0x4, offset = 0x4, fixed_abs, tag = 'smem constant byte address 0x4 - core index']
  #allocation1 [shape = 'u32[72,128]{1,0:T(1,128)}', space=vmem, size = 0x9000, scoped, tag = 'internal scratch']
  %s0 = inlined_call_operand.hbm [shape: f32[768,128], index: 0, kind: input, shape index: {}]
  %s1 = inlined_call_operand.hbm [shape: f32[768,128], index: 1, kind: output, shape index: {0}]
  %s2 = inlined_call_operand.hbm [shape: bf16[768,128], index: 2, kind: output, shape index: {1}]
  %3 = xla_tuple %s1, %s2
  %s4 = sld [smem:[#allocation0]]
  $region49: #{tpu_custom_call.1} parent=0
    _
  %s6 = ssub.s32 1, %s4
  %s7 = scalar_select 0, %s6, %s4
  $region1: #{tpu_custom_call.1} parent=0
    #allocation2 [shape = 'u8[393216]{0}', space=vmem, size = 0x60000, scoped, tag = 'input window, operand 0']
    #allocation3 [shape = 's32[2]{0}', space=sflag, size = 0x8, scoped, tag = 'scoped memory for tpu_custom_call.1']
    #allocation4 [shape = 's32[2]{0}', space=sflag, size = 0x8, scoped, tag = 'scoped memory for tpu_custom_call.1']
    #allocation5 [shape = 'u8[393216]{0}', space=vmem, size = 0x60000, scoped, tag = 'output window, operand 0']
    #allocation6 [shape = 'u8[196608]{0}', space=vmem, size = 0x30000, scoped, tag = 'output window, operand 1']
    #allocation7 [shape = 's32[2]{0}', space=sflag, size = 0x8, scoped, tag = 'scoped memory for tpu_custom_call.1']
    %8 = vsyncpa [#allocation3], 0
    %s9 = scalar_lea.sflag [#allocation3], 1
    %10 = vsyncpa %s9, 0
    %11 = vsyncpa [#allocation4], 0
    %s12 = scalar_lea.sflag [#allocation4], 1
    %13 = vsyncpa %s12, 0
    %14 = vsyncpa [#allocation7], 0
    %s15 = scalar_lea.sflag [#allocation7], 1
    %16 = vsyncpa %s15, 0
    loop: start=0, step=1, limit=4
    $region2: #{tpu_custom_call.1} parent=1 // loop_pre_header
      _
    $region3: #{tpu_custom_call.1} parent=1 // loop_header
      %s18 = sphi 0, %s22
      %p19 = scmp.ge.s32.totalorder %s18, 4
      %s28 = sphi 0, %s30
      %s31 = sphi 0, %s28
      %s32 = sphi 0, %s31
      %s48 = sphi 0, %s32
      %s54 = sphi 0, %s56
      %s57 = sphi 0, %s54
      %s58 = sphi 0, %s57
      %s74 = sphi 0, %s58
      %s80 = sphi 0, %s82
      %s83 = sphi 0, %s80
      %s84 = sphi 0, %s83
      %s100 = sphi 0, %s84
    $region4: #{tpu_custom_call.1} parent=1 // loop_header_branch
      %21 = sbr.rel (%p19) target = $region8
    $region5: #{tpu_custom_call.1} parent=1 // loop_body
      %s23 = ssub.s32 %s18, 1
      %s24 = ssub.s32 %s18, 2
      %s25 = sadd.s32 %s18, 1
      %s26 = ssub.s32 %s18, %s25
      %p27 = scmp.eq.s32.totalorder %s26, 0
      %s29 = sadd.s32 %s28, 1
      %s30 = scalar_select %p27, %s28, %s29
      %p33 = pneg %p27
      %p34 = scmp.eq.s32.totalorder %s18, 1
      %p35 = por %p33, %p34
      %p36 = scmp.ne.s32.totalorder %s28, %s31
      %p37 = scmp.eq.s32.totalorder %s18, 0
      %p38 = por %p36, %p37
      %p39 = scmp.ne.s32.totalorder %s28, %s31
      %p40 = scmp.eq.s32.totalorder %s23, 1
      %p41 = por %p39, %p40
      %p42 = scmp.ne.s32.totalorder %s31, %s32
      %p43 = scmp.eq.s32.totalorder %s23, 0
      %p44 = por %p42, %p43
      %p45 = scmp.ne.s32.totalorder %s31, %s32
      %p46 = scmp.eq.s32.totalorder %s24, 1
      %p47 = por %p45, %p46
      %p49 = scmp.ne.s32.totalorder %s32, %s48
      %p50 = scmp.eq.s32.totalorder %s24, 0
      %p51 = por %p49, %p50
      %s52 = ssub.s32 %s18, %s25
      %p53 = scmp.eq.s32.totalorder %s52, 0
      %s55 = sadd.s32 %s54, 1
      %s56 = scalar_select %p53, %s54, %s55
      %p59 = pneg %p53
      %p60 = scmp.eq.s32.totalorder %s18, 1
      %p61 = por %p59, %p60
      %p62 = scmp.ne.s32.totalorder %s54, %s57
      %p63 = scmp.eq.s32.totalorder %s18, 0
      %p64 = por %p62, %p63
      %p65 = scmp.ne.s32.totalorder %s54, %s57
      %p66 = scmp.eq.s32.totalorder %s23, 1
      %p67 = por %p65, %p66
      %p68 = scmp.ne.s32.totalorder %s57, %s58
      %p69 = scmp.eq.s32.totalorder %s23, 0
      %p70 = por %p68, %p69
      %p71 = scmp.ne.s32.totalorder %s57, %s58
      %p72 = scmp.eq.s32.totalorder %s24, 1
      %p73 = por %p71, %p72
      %p75 = scmp.ne.s32.totalorder %s58, %s74
      %p76 = scmp.eq.s32.totalorder %s24, 0
      %p77 = por %p75, %p76
      %s78 = ssub.s32 %s18, %s25
      %p79 = scmp.eq.s32.totalorder %s78, 0
      %s81 = sadd.s32 %s80, 1
      %s82 = scalar_select %p79, %s80, %s81
      %p85 = pneg %p79
      %p86 = scmp.eq.s32.totalorder %s18, 1
      %p87 = por %p85, %p86
      %p88 = scmp.ne.s32.totalorder %s80, %s83
      %p89 = scmp.eq.s32.totalorder %s18, 0
      %p90 = por %p88, %p89
      %p91 = scmp.ne.s32.totalorder %s80, %s83
      %p92 = scmp.eq.s32.totalorder %s23, 1
      %p93 = por %p91, %p92
      %p94 = scmp.ne.s32.totalorder %s83, %s84
      %p95 = scmp.eq.s32.totalorder %s23, 0
      %p96 = por %p94, %p95
      %p97 = scmp.ne.s32.totalorder %s83, %s84
      %p98 = scmp.eq.s32.totalorder %s24, 1
      %p99 = por %p97, %p98
      %p101 = scmp.ne.s32.totalorder %s84, %s100
      %p102 = scmp.eq.s32.totalorder %s24, 0
      %p103 = por %p101, %p102
      %p104 = scmp.le.s32.totalorder 1, %s18
      %p105 = scmp.lt.s32.totalorder %s18, 3
      %p106 = pnand %p104, %p105
      %p107 = pneg %p106
      // Predicated region
      $region9: #{tpu_custom_call.1} parent=5 // pred_check
        _
      $region10: #{tpu_custom_call.1} parent=5 // pred_check_branch
        %109 = sbr.rel (%p106) target = $region12
      $region11: #{tpu_custom_call.1} parent=5 // pred_region
        %s110 = ssub.s32 %s18, 1
      $region12: #{tpu_custom_call.1} parent=5 // pred_fallthru
        _
      %p111 = scmp.lt.s32.totalorder %s18, 2
      // Predicated region
      $region13: #{tpu_custom_call.1} parent=5 // pred_check
        %p112 = pneg %p111
      $region14: #{tpu_custom_call.1} parent=5 // pred_check_branch
        %114 = sbr.rel (%p112) target = $region16
      $region15: #{tpu_custom_call.1} parent=5 // pred_region
        // Predicated region
        $region17: #{tpu_custom_call.1} parent=15 // pred_check
          %p115 = pneg %p38
        $region18: #{tpu_custom_call.1} parent=15 // pred_check_branch
          %117 = sbr.rel (%p115) target = $region20
        $region19: #{tpu_custom_call.1} parent=15 // pred_region
          %s118 = sand.u32 %s28, 1
          %s119 = scalar_lea.sflag [#allocation3], %s118
          %s120 = sand.u32 %s28, 1
          %s121 = smul.addr %s120, 384
          %s122 = scalar_lea.vmem [#allocation2], %s121
          %s123 = smul.u32 48, %s18
          %125 = vsyncadd %s119, 0
          %s126 = smul.addr %s123, 8
          %s127 = scalar_lea.hbm %s0, %s126
          %s128 = sshll.u32 %s127, 4
          %s129 = int_to_ptr.hbm [resolvable:$true] %s128
          %s130 = sshll.u32 %s122, 4
          %s131 = int_to_ptr.vmem [resolvable:$true] %s130
          %136 = dma.hbm_to_vmem [thread:$0]  %s129, 6144, %s131, %s119, 128, 128, 8
        $region20: #{tpu_custom_call.1} parent=15 // pred_fallthru
          _
      $region16: #{tpu_custom_call.1} parent=5 // pred_fallthru
        _
      %p137 = scmp.le.s32.totalorder 1, %s18
      %p138 = scmp.lt.s32.totalorder %s18, 3
      %p139 = pnand %p137, %p138
      %p140 = pneg %p139
      // Predicated region
      $region21: #{tpu_custom_call.1} parent=5 // pred_check
        _
      $region22: #{tpu_custom_call.1} parent=5 // pred_check_branch
        %142 = sbr.rel (%p139) target = $region24
      $region23: #{tpu_custom_call.1} parent=5 // pred_region
        %s143 = ssub.s32 %s18, 1
        %s144 = sand.u32 %s31, 1
        %s145 = scalar_lea.sflag [#allocation3], %s144
        %s146 = sand.u32 %s31, 1
        %s147 = smul.addr %s146, 384
        %s148 = scalar_lea.vmem [#allocation2], %s147
        // Predicated region
        $region25: #{tpu_custom_call.1} parent=23 // pred_check
          %p149 = pneg %p44
        $region26: #{tpu_custom_call.1} parent=23 // pred_check_branch
          %151 = sbr.rel (%p149) target = $region28
        $region27: #{tpu_custom_call.1} parent=23 // pred_region
          %153 = dma.done %s145, 6144
        $region28: #{tpu_custom_call.1} parent=23 // pred_fallthru
          _
        %s154 = sand.u32 %s31, 1
        %s155 = scalar_lea.sflag [#allocation3], %s154
        %s156 = sand.u32 %s31, 1
        %s157 = smul.addr %s156, 384
        %s158 = scalar_lea.vmem [#allocation2], %s157
        %p159 = pneg %p44
        %p160 = pneg %p41
        %p161 = pneg %p70
        %p162 = pneg %p67
        %s163 = sand.u32 %s57, 1
        %s164 = scalar_lea.sflag [#allocation4], %s163
        %s165 = sand.u32 %s57, 1
        %s166 = smul.addr %s165, 384
        %s167 = scalar_lea.vmem [#allocation5], %s166
        %p168 = pneg %p96
        %p169 = pneg %p93
        %s170 = sand.u32 %s83, 1
        %s171 = scalar_lea.sflag [#allocation7], %s170
        %s172 = sand.u32 %s83, 1
        %s173 = smul.addr %s172, 192
        %s174 = scalar_lea.vmem [#allocation6], %s173
        %s175 = smul.u32 48, %s23
        %s176 = smul.u32 48, %s23
        %s177 = smul.u32 48, %s23
        %v178 = vld [vmem:[%s148] sm:$0xff]
        %v179 = vld [vmem:[%s148 + $0x8] sm:$0xff]
        %v180 = vld [vmem:[%s148 + $0x10] sm:$0xff]
        %v181 = vld [vmem:[%s148 + $0x18] sm:$0xff]
        %v182 = vld [vmem:[%s148 + $0x20] sm:$0xff]
        %v183 = vld [vmem:[%s148 + $0x28] sm:$0xff]
        %v184 = vld [vmem:[%s148 + $0x30] sm:$0xff]
        %v185 = vld [vmem:[%s148 + $0x38] sm:$0xff]
        %v186 = vld [vmem:[%s148 + $0x40] sm:$0xff]
        %v187 = vld [vmem:[%s148 + $0x48] sm:$0xff]
        %v188 = vld [vmem:[%s148 + $0x50] sm:$0xff]
        %v189 = vld [vmem:[%s148 + $0x58] sm:$0xff]
        %v190 = vld [vmem:[%s148 + $0x60] sm:$0xff]
        %v191 = vld [vmem:[%s148 + $0x68] sm:$0xff]
        %v192 = vld [vmem:[%s148 + $0x70] sm:$0xff]
        %v193 = vld [vmem:[%s148 + $0x78] sm:$0xff]
        %v194 = vld [vmem:[%s148 + $0x80] sm:$0xff]
        %v195 = vld [vmem:[%s148 + $0x88] sm:$0xff]
        %v196 = vld [vmem:[%s148 + $0x90] sm:$0xff]
        %v197 = vld [vmem:[%s148 + $0x98] sm:$0xff]
        %v198 = vld [vmem:[%s148 + $0xa0] sm:$0xff]
        %v199 = vld [vmem:[%s148 + $0xa8] sm:$0xff]
        %v200 = vld [vmem:[%s148 + $0xb0] sm:$0xff]
        %v201 = vld [vmem:[%s148 + $0xb8] sm:$0xff]
        %v202 = vld [vmem:[%s148 + $0xc0] sm:$0xff]
        %v203 = vld [vmem:[%s148 + $0xc8] sm:$0xff]
        %v204 = vld [vmem:[%s148 + $0xd0] sm:$0xff]
        %v205 = vld [vmem:[%s148 + $0xd8] sm:$0xff]
        %v206 = vld [vmem:[%s148 + $0xe0] sm:$0xff]
        %v207 = vld [vmem:[%s148 + $0xe8] sm:$0xff]
        %v208 = vld [vmem:[%s148 + $0xf0] sm:$0xff]
        %v209 = vld [vmem:[%s148 + $0xf8] sm:$0xff]
        %v210 = vld [vmem:[%s148 + $0x100] sm:$0xff]
        %v211 = vld [vmem:[%s148 + $0x108] sm:$0xff]
        %v212 = vld [vmem:[%s148 + $0x110] sm:$0xff]
        %v213 = vld [vmem:[%s148 + $0x118] sm:$0xff]
        %v214 = vld [vmem:[%s148 + $0x120] sm:$0xff]
        %v215 = vld [vmem:[%s148 + $0x128] sm:$0xff]
        %v216 = vld [vmem:[%s148 + $0x130] sm:$0xff]
        %v217 = vld [vmem:[%s148 + $0x138] sm:$0xff]
        %v218 = vld [vmem:[%s148 + $0x140] sm:$0xff]
        %v219 = vld [vmem:[%s148 + $0x148] sm:$0xff]
        %v220 = vld [vmem:[%s148 + $0x150] sm:$0xff]
        %v221 = vld [vmem:[%s148 + $0x158] sm:$0xff]
        %v222 = vld [vmem:[%s148 + $0x160] sm:$0xff]
        %v223 = vld [vmem:[%s148 + $0x168] sm:$0xff]
        %v224 = vld [vmem:[%s148 + $0x170] sm:$0xff]
        %v225 = vld [vmem:[%s148 + $0x178] sm:$0xff]
        %v226 = vmul.f32 %v178, %v178
        %v227 = vmul.f32 %v179, %v179
        %v228 = vmul.f32 %v180, %v180
        %v229 = vmul.f32 %v181, %v181
        %v230 = vmul.f32 %v182, %v182
        %v231 = vmul.f32 %v183, %v183
        %v232 = vmul.f32 %v184, %v184
        %v233 = vmul.f32 %v185, %v185
        %v234 = vmul.f32 %v186, %v186
        %v235 = vmul.f32 %v187, %v187
        %v236 = vmul.f32 %v188, %v188
        %v237 = vmul.f32 %v189, %v189
        %v238 = vmul.f32 %v190, %v190
        %v239 = vmul.f32 %v191, %v191
        %v240 = vmul.f32 %v192, %v192
        %v241 = vmul.f32 %v193, %v193
        %v242 = vmul.f32 %v194, %v194
        %v243 = vmul.f32 %v195, %v195
        %v244 = vmul.f32 %v196, %v196
        %v245 = vmul.f32 %v197, %v197
        %v246 = vmul.f32 %v198, %v198
        %v247 = vmul.f32 %v199, %v199
        %v248 = vmul.f32 %v200, %v200
        %v249 = vmul.f32 %v201, %v201
        %v250 = vmul.f32 %v202, %v202
        %v251 = vmul.f32 %v203, %v203
        %v252 = vmul.f32 %v204, %v204
        %v253 = vmul.f32 %v205, %v205
        %v254 = vmul.f32 %v206, %v206
        %v255 = vmul.f32 %v207, %v207
        %v256 = vmul.f32 %v208, %v208
        %v257 = vmul.f32 %v209, %v209
        %v258 = vmul.f32 %v210, %v210
        %v259 = vmul.f32 %v211, %v211
        %v260 = vmul.f32 %v212, %v212
        %v261 = vmul.f32 %v213, %v213
        %v262 = vmul.f32 %v214, %v214
        %v263 = vmul.f32 %v215, %v215
        %v264 = vmul.f32 %v216, %v216
        %v265 = vmul.f32 %v217, %v217
        %v266 = vmul.f32 %v218, %v218
        %v267 = vmul.f32 %v219, %v219
        %v268 = vmul.f32 %v220, %v220
        %v269 = vmul.f32 %v221, %v221
        %v270 = vmul.f32 %v222, %v222
        %v271 = vmul.f32 %v223, %v223
        %v272 = vmul.f32 %v224, %v224
        %v273 = vmul.f32 %v225, %v225
        %274 = vadd.xlane.f32.xlu0 %v226
        %v275 = vpop.xlane.xlu0 %274
        %276 = vadd.xlane.f32.xlu0 %v227
        %v277 = vpop.xlane.xlu0 %276
        %278 = vadd.xlane.f32.xlu0 %v228
        %v279 = vpop.xlane.xlu0 %278
        %280 = vadd.xlane.f32.xlu0 %v229
        %v281 = vpop.xlane.xlu0 %280
        %282 = vadd.xlane.f32.xlu0 %v230
        %v283 = vpop.xlane.xlu0 %282
        %284 = vadd.xlane.f32.xlu0 %v231
        %v285 = vpop.xlane.xlu0 %284
        %286 = vadd.xlane.f32.xlu0 %v232
        %v287 = vpop.xlane.xlu0 %286
        %288 = vadd.xlane.f32.xlu0 %v233
        %v289 = vpop.xlane.xlu0 %288
        %290 = vadd.xlane.f32.xlu0 %v234
        %v291 = vpop.xlane.xlu0 %290
        %292 = vadd.xlane.f32.xlu0 %v235
        %v293 = vpop.xlane.xlu0 %292
        %294 = vadd.xlane.f32.xlu0 %v236
        %v295 = vpop.xlane.xlu0 %294
        %296 = vadd.xlane.f32.xlu0 %v237
        %v297 = vpop.xlane.xlu0 %296
        %298 = vadd.xlane.f32.xlu0 %v238
        %v299 = vpop.xlane.xlu0 %298
        %300 = vadd.xlane.f32.xlu0 %v239
        %v301 = vpop.xlane.xlu0 %300
        %302 = vadd.xlane.f32.xlu0 %v240
        %v303 = vpop.xlane.xlu0 %302
        %304 = vadd.xlane.f32.xlu0 %v241
        %v305 = vpop.xlane.xlu0 %304
        %306 = vadd.xlane.f32.xlu0 %v242
        %v307 = vpop.xlane.xlu0 %306
        %308 = vadd.xlane.f32.xlu0 %v243
        %v309 = vpop.xlane.xlu0 %308
        %310 = vadd.xlane.f32.xlu0 %v244
        %v311 = vpop.xlane.xlu0 %310
        %312 = vadd.xlane.f32.xlu0 %v245
        %v313 = vpop.xlane.xlu0 %312
        %314 = vadd.xlane.f32.xlu0 %v246
        %v315 = vpop.xlane.xlu0 %314
        %316 = vadd.xlane.f32.xlu0 %v247
        %v317 = vpop.xlane.xlu0 %316
        %318 = vadd.xlane.f32.xlu0 %v248
        %v319 = vpop.xlane.xlu0 %318
        %320 = vadd.xlane.f32.xlu0 %v249
        %v321 = vpop.xlane.xlu0 %320
        %322 = vadd.xlane.f32.xlu0 %v250
        %v323 = vpop.xlane.xlu0 %322
        %324 = vadd.xlane.f32.xlu0 %v251
        %v325 = vpop.xlane.xlu0 %324
        %326 = vadd.xlane.f32.xlu0 %v252
        %v327 = vpop.xlane.xlu0 %326
        %328 = vadd.xlane.f32.xlu0 %v253
        %v329 = vpop.xlane.xlu0 %328
        %330 = vadd.xlane.f32.xlu0 %v254
        %v331 = vpop.xlane.xlu0 %330
        %332 = vadd.xlane.f32.xlu0 %v255
        %v333 = vpop.xlane.xlu0 %332
        %334 = vadd.xlane.f32.xlu0 %v256
        %v335 = vpop.xlane.xlu0 %334
        %336 = vadd.xlane.f32.xlu0 %v257
        %v337 = vpop.xlane.xlu0 %336
        %338 = vadd.xlane.f32.xlu0 %v258
        %v339 = vpop.xlane.xlu0 %338
        %340 = vadd.xlane.f32.xlu0 %v259
        %v341 = vpop.xlane.xlu0 %340
        %342 = vadd.xlane.f32.xlu0 %v260
        %v343 = vpop.xlane.xlu0 %342
        %344 = vadd.xlane.f32.xlu0 %v261
        %v345 = vpop.xlane.xlu0 %344
        %346 = vadd.xlane.f32.xlu0 %v262
        %v347 = vpop.xlane.xlu0 %346
        %348 = vadd.xlane.f32.xlu0 %v263
        %v349 = vpop.xlane.xlu0 %348
        %350 = vadd.xlane.f32.xlu0 %v264
        %v351 = vpop.xlane.xlu0 %350
        %352 = vadd.xlane.f32.xlu0 %v265
        %v353 = vpop.xlane.xlu0 %352
        %354 = vadd.xlane.f32.xlu0 %v266
        %v355 = vpop.xlane.xlu0 %354
        %356 = vadd.xlane.f32.xlu0 %v267
        %v357 = vpop.xlane.xlu0 %356
        %358 = vadd.xlane.f32.xlu0 %v268
        %v359 = vpop.xlane.xlu0 %358
        %360 = vadd.xlane.f32.xlu0 %v269
        %v361 = vpop.xlane.xlu0 %360
        %362 = vadd.xlane.f32.xlu0 %v270
        %v363 = vpop.xlane.xlu0 %362
        %364 = vadd.xlane.f32.xlu0 %v271
        %v365 = vpop.xlane.xlu0 %364
        %366 = vadd.xlane.f32.xlu0 %v272
        %v367 = vpop.xlane.xlu0 %366
        %368 = vadd.xlane.f32.xlu0 %v273
        %v369 = vpop.xlane.xlu0 %368
        %v370 = vrsqrt.pop %v275
        %v371 = vmul.f32 %v370, %v275
        %v372 = vmul.f32 %v371, %v370
        %v373 = vmul.f32 0.5, %v372
        %v374 = vsub.f32 1.5, %v373
        %v375 = vmul.f32 %v370, %v374
        %v376 = vmul.f32 %v275, %v375
        %vm377 = vcmp.eq.f32.partialorder %v275, inf
        %v378 = vsel %vm377, %v275, %v376
        %vm379 = vcmp.eq.f32.partialorder %v275, 0.0
        %v380 = vand.u32 %v275, 2147483648
        %v381 = vsel %vm379, %v380, %v378
        %v382 = vrsqrt.pop %v277
        %v383 = vmul.f32 %v382, %v277
        %v384 = vmul.f32 %v383, %v382
        %v385 = vmul.f32 0.5, %v384
        %v386 = vsub.f32 1.5, %v385
        %v387 = vmul.f32 %v382, %v386
        %v388 = vmul.f32 %v277, %v387
        %vm389 = vcmp.eq.f32.partialorder %v277, inf
        %v390 = vsel %vm389, %v277, %v388
        %vm391 = vcmp.eq.f32.partialorder %v277, 0.0
        %v392 = vand.u32 %v277, 2147483648
        %v393 = vsel %vm391, %v392, %v390
        %v394 = vrsqrt.pop %v279
        %v395 = vmul.f32 %v394, %v279
        %v396 = vmul.f32 %v395, %v394
        %v397 = vmul.f32 0.5, %v396
        %v398 = vsub.f32 1.5, %v397
        %v399 = vmul.f32 %v394, %v398
        %v400 = vmul.f32 %v279, %v399
        %vm401 = vcmp.eq.f32.partialorder %v279, inf
        %v402 = vsel %vm401, %v279, %v400
        %vm403 = vcmp.eq.f32.partialorder %v279, 0.0
        %v404 = vand.u32 %v279, 2147483648
        %v405 = vsel %vm403, %v404, %v402
        %v406 = vrsqrt.pop %v281
        %v407 = vmul.f32 %v406, %v281
        %v408 = vmul.f32 %v407, %v406
        %v409 = vmul.f32 0.5, %v408
        %v410 = vsub.f32 1.5, %v409
        %v411 = vmul.f32 %v406, %v410
        %v412 = vmul.f32 %v281, %v411
        %vm413 = vcmp.eq.f32.partialorder %v281, inf
        %v414 = vsel %vm413, %v281, %v412
        %vm415 = vcmp.eq.f32.partialorder %v281, 0.0
        %v416 = vand.u32 %v281, 2147483648
        %v417 = vsel %vm415, %v416, %v414
        %v418 = vrsqrt.pop %v283
        %v419 = vmul.f32 %v418, %v283
        %v420 = vmul.f32 %v419, %v418
        %v421 = vmul.f32 0.5, %v420
        %v422 = vsub.f32 1.5, %v421
        %v423 = vmul.f32 %v418, %v422
        %v424 = vmul.f32 %v283, %v423
        %vm425 = vcmp.eq.f32.partialorder %v283, inf
        %v426 = vsel %vm425, %v283, %v424
        %vm427 = vcmp.eq.f32.partialorder %v283, 0.0
        %v428 = vand.u32 %v283, 2147483648
        %v429 = vsel %vm427, %v428, %v426
        %v430 = vrsqrt.pop %v285
        %v431 = vmul.f32 %v430, %v285
        %v432 = vmul.f32 %v431, %v430
        %v433 = vmul.f32 0.5, %v432
        %v434 = vsub.f32 1.5, %v433
        %v435 = vmul.f32 %v430, %v434
        %v436 = vmul.f32 %v285, %v435
        %vm437 = vcmp.eq.f32.partialorder %v285, inf
        %v438 = vsel %vm437, %v285, %v436
        %vm439 = vcmp.eq.f32.partialorder %v285, 0.0
        %v440 = vand.u32 %v285, 2147483648
        %v441 = vsel %vm439, %v440, %v438
        %v442 = vrsqrt.pop %v287
        %v443 = vmul.f32 %v442, %v287
        %v444 = vmul.f32 %v443, %v442
        %v445 = vmul.f32 0.5, %v444
        %v446 = vsub.f32 1.5, %v445
        %v447 = vmul.f32 %v442, %v446
        %v448 = vmul.f32 %v287, %v447
        %vm449 = vcmp.eq.f32.partialorder %v287, inf
        %v450 = vsel %vm449, %v287, %v448
        %vm451 = vcmp.eq.f32.partialorder %v287, 0.0
        %v452 = vand.u32 %v287, 2147483648
        %v453 = vsel %vm451, %v452, %v450
        %v454 = vrsqrt.pop %v289
        %v455 = vmul.f32 %v454, %v289
        %v456 = vmul.f32 %v455, %v454
        %v457 = vmul.f32 0.5, %v456
        %v458 = vsub.f32 1.5, %v457
        %v459 = vmul.f32 %v454, %v458
        %v460 = vmul.f32 %v289, %v459
        %vm461 = vcmp.eq.f32.partialorder %v289, inf
        %v462 = vsel %vm461, %v289, %v460
        %vm463 = vcmp.eq.f32.partialorder %v289, 0.0
        %v464 = vand.u32 %v289, 2147483648
        %v465 = vsel %vm463, %v464, %v462
        %v466 = vrsqrt.pop %v291
        %v467 = vmul.f32 %v466, %v291
        %v468 = vmul.f32 %v467, %v466
        %v469 = vmul.f32 0.5, %v468
        %v470 = vsub.f32 1.5, %v469
        %v471 = vmul.f32 %v466, %v470
        %v472 = vmul.f32 %v291, %v471
        %vm473 = vcmp.eq.f32.partialorder %v291, inf
        %v474 = vsel %vm473, %v291, %v472
        %vm475 = vcmp.eq.f32.partialorder %v291, 0.0
        %v476 = vand.u32 %v291, 2147483648
        %v477 = vsel %vm475, %v476, %v474
        %v478 = vrsqrt.pop %v293
        %v479 = vmul.f32 %v478, %v293
        %v480 = vmul.f32 %v479, %v478
        %v481 = vmul.f32 0.5, %v480
        %v482 = vsub.f32 1.5, %v481
        %v483 = vmul.f32 %v478, %v482
        %v484 = vmul.f32 %v293, %v483
        %vm485 = vcmp.eq.f32.partialorder %v293, inf
        %v486 = vsel %vm485, %v293, %v484
        %vm487 = vcmp.eq.f32.partialorder %v293, 0.0
        %v488 = vand.u32 %v293, 2147483648
        %v489 = vsel %vm487, %v488, %v486
        %v490 = vrsqrt.pop %v295
        %v491 = vmul.f32 %v490, %v295
        %v492 = vmul.f32 %v491, %v490
        %v493 = vmul.f32 0.5, %v492
        %v494 = vsub.f32 1.5, %v493
        %v495 = vmul.f32 %v490, %v494
        %v496 = vmul.f32 %v295, %v495
        %vm497 = vcmp.eq.f32.partialorder %v295, inf
        %v498 = vsel %vm497, %v295, %v496
        %vm499 = vcmp.eq.f32.partialorder %v295, 0.0
        %v500 = vand.u32 %v295, 2147483648
        %v501 = vsel %vm499, %v500, %v498
        %v502 = vrsqrt.pop %v297
        %v503 = vmul.f32 %v502, %v297
        %v504 = vmul.f32 %v503, %v502
        %v505 = vmul.f32 0.5, %v504
        %v506 = vsub.f32 1.5, %v505
        %v507 = vmul.f32 %v502, %v506
        %v508 = vmul.f32 %v297, %v507
        %vm509 = vcmp.eq.f32.partialorder %v297, inf
        %v510 = vsel %vm509, %v297, %v508
        %vm511 = vcmp.eq.f32.partialorder %v297, 0.0
        %v512 = vand.u32 %v297, 2147483648
        %v513 = vsel %vm511, %v512, %v510
        %v514 = vrsqrt.pop %v299
        %v515 = vmul.f32 %v514, %v299
        %v516 = vmul.f32 %v515, %v514
        %v517 = vmul.f32 0.5, %v516
        %v518 = vsub.f32 1.5, %v517
        %v519 = vmul.f32 %v514, %v518
        %v520 = vmul.f32 %v299, %v519
        %vm521 = vcmp.eq.f32.partialorder %v299, inf
        %v522 = vsel %vm521, %v299, %v520
        %vm523 = vcmp.eq.f32.partialorder %v299, 0.0
        %v524 = vand.u32 %v299, 2147483648
        %v525 = vsel %vm523, %v524, %v522
        %v526 = vrsqrt.pop %v301
        %v527 = vmul.f32 %v526, %v301
        %v528 = vmul.f32 %v527, %v526
        %v529 = vmul.f32 0.5, %v528
        %v530 = vsub.f32 1.5, %v529
        %v531 = vmul.f32 %v526, %v530
        %v532 = vmul.f32 %v301, %v531
        %vm533 = vcmp.eq.f32.partialorder %v301, inf
        %v534 = vsel %vm533, %v301, %v532
        %vm535 = vcmp.eq.f32.partialorder %v301, 0.0
        %v536 = vand.u32 %v301, 2147483648
        %v537 = vsel %vm535, %v536, %v534
        %v538 = vrsqrt.pop %v303
        %v539 = vmul.f32 %v538, %v303
        %v540 = vmul.f32 %v539, %v538
        %v541 = vmul.f32 0.5, %v540
        %v542 = vsub.f32 1.5, %v541
        %v543 = vmul.f32 %v538, %v542
        %v544 = vmul.f32 %v303, %v543
        %vm545 = vcmp.eq.f32.partialorder %v303, inf
        %v546 = vsel %vm545, %v303, %v544
        %vm547 = vcmp.eq.f32.partialorder %v303, 0.0
        %v548 = vand.u32 %v303, 2147483648
        %v549 = vsel %vm547, %v548, %v546
        %v550 = vrsqrt.pop %v305
        %v551 = vmul.f32 %v550, %v305
        %v552 = vmul.f32 %v551, %v550
        %v553 = vmul.f32 0.5, %v552
        %v554 = vsub.f32 1.5, %v553
        %v555 = vmul.f32 %v550, %v554
        %v556 = vmul.f32 %v305, %v555
        %vm557 = vcmp.eq.f32.partialorder %v305, inf
        %v558 = vsel %vm557, %v305, %v556
        %vm559 = vcmp.eq.f32.partialorder %v305, 0.0
        %v560 = vand.u32 %v305, 2147483648
        %v561 = vsel %vm559, %v560, %v558
        %v562 = vrsqrt.pop %v307
        %v563 = vmul.f32 %v562, %v307
        %v564 = vmul.f32 %v563, %v562
        %v565 = vmul.f32 0.5, %v564
        %v566 = vsub.f32 1.5, %v565
        %v567 = vmul.f32 %v562, %v566
        %v568 = vmul.f32 %v307, %v567
        %vm569 = vcmp.eq.f32.partialorder %v307, inf
        %v570 = vsel %vm569, %v307, %v568
        %vm571 = vcmp.eq.f32.partialorder %v307, 0.0
        %v572 = vand.u32 %v307, 2147483648
        %v573 = vsel %vm571, %v572, %v570
        %v574 = vrsqrt.pop %v309
        %v575 = vmul.f32 %v574, %v309
        %v576 = vmul.f32 %v575, %v574
        %v577 = vmul.f32 0.5, %v576
        %v578 = vsub.f32 1.5, %v577
        %v579 = vmul.f32 %v574, %v578
        %v580 = vmul.f32 %v309, %v579
        %vm581 = vcmp.eq.f32.partialorder %v309, inf
        %v582 = vsel %vm581, %v309, %v580
        %vm583 = vcmp.eq.f32.partialorder %v309, 0.0
        %v584 = vand.u32 %v309, 2147483648
        %v585 = vsel %vm583, %v584, %v582
        %v586 = vrsqrt.pop %v311
        %v587 = vmul.f32 %v586, %v311
        %v588 = vmul.f32 %v587, %v586
        %v589 = vmul.f32 0.5, %v588
        %v590 = vsub.f32 1.5, %v589
        %v591 = vmul.f32 %v586, %v590
        %v592 = vmul.f32 %v311, %v591
        %vm593 = vcmp.eq.f32.partialorder %v311, inf
        %v594 = vsel %vm593, %v311, %v592
        %vm595 = vcmp.eq.f32.partialorder %v311, 0.0
        %v596 = vand.u32 %v311, 2147483648
        %v597 = vsel %vm595, %v596, %v594
        %v598 = vrsqrt.pop %v313
        %v599 = vmul.f32 %v598, %v313
        %v600 = vmul.f32 %v599, %v598
        %v601 = vmul.f32 0.5, %v600
        %v602 = vsub.f32 1.5, %v601
        %v603 = vmul.f32 %v598, %v602
        %v604 = vmul.f32 %v313, %v603
        %vm605 = vcmp.eq.f32.partialorder %v313, inf
        %v606 = vsel %vm605, %v313, %v604
        %vm607 = vcmp.eq.f32.partialorder %v313, 0.0
        %v608 = vand.u32 %v313, 2147483648
        %v609 = vsel %vm607, %v608, %v606
        %v610 = vrsqrt.pop %v315
        %v611 = vmul.f32 %v610, %v315
        %v612 = vmul.f32 %v611, %v610
        %v613 = vmul.f32 0.5, %v612
        %v614 = vsub.f32 1.5, %v613
        %v615 = vmul.f32 %v610, %v614
        %v616 = vmul.f32 %v315, %v615
        %vm617 = vcmp.eq.f32.partialorder %v315, inf
        %v618 = vsel %vm617, %v315, %v616
        %vm619 = vcmp.eq.f32.partialorder %v315, 0.0
        %v620 = vand.u32 %v315, 2147483648
        %v621 = vsel %vm619, %v620, %v618
        %v622 = vrsqrt.pop %v317
        %v623 = vmul.f32 %v622, %v317
        %v624 = vmul.f32 %v623, %v622
        %v625 = vmul.f32 0.5, %v624
        %v626 = vsub.f32 1.5, %v625
        %v627 = vmul.f32 %v622, %v626
        %v628 = vmul.f32 %v317, %v627
        %vm629 = vcmp.eq.f32.partialorder %v317, inf
        %v630 = vsel %vm629, %v317, %v628
        %vm631 = vcmp.eq.f32.partialorder %v317, 0.0
        %v632 = vand.u32 %v317, 2147483648
        %v633 = vsel %vm631, %v632, %v630
        %v634 = vrsqrt.pop %v319
        %v635 = vmul.f32 %v634, %v319
        %v636 = vmul.f32 %v635, %v634
        %v637 = vmul.f32 0.5, %v636
        %v638 = vsub.f32 1.5, %v637
        %v639 = vmul.f32 %v634, %v638
        %v640 = vmul.f32 %v319, %v639
        %vm641 = vcmp.eq.f32.partialorder %v319, inf
        %v642 = vsel %vm641, %v319, %v640
        %vm643 = vcmp.eq.f32.partialorder %v319, 0.0
        %v644 = vand.u32 %v319, 2147483648
        %v645 = vsel %vm643, %v644, %v642
        %v646 = vrsqrt.pop %v321
        %v647 = vmul.f32 %v646, %v321
        %v648 = vmul.f32 %v647, %v646
        %v649 = vmul.f32 0.5, %v648
        %v650 = vsub.f32 1.5, %v649
        %v651 = vmul.f32 %v646, %v650
        %v652 = vmul.f32 %v321, %v651
        %vm653 = vcmp.eq.f32.partialorder %v321, inf
        %v654 = vsel %vm653, %v321, %v652
        %vm655 = vcmp.eq.f32.partialorder %v321, 0.0
        %v656 = vand.u32 %v321, 2147483648
        %v657 = vsel %vm655, %v656, %v654
        %v658 = vrsqrt.pop %v323
        %v659 = vmul.f32 %v658, %v323
        %v660 = vmul.f32 %v659, %v658
        %v661 = vmul.f32 0.5, %v660
        %v662 = vsub.f32 1.5, %v661
        %v663 = vmul.f32 %v658, %v662
        %v664 = vmul.f32 %v323, %v663
        %vm665 = vcmp.eq.f32.partialorder %v323, inf
        %v666 = vsel %vm665, %v323, %v664
        %vm667 = vcmp.eq.f32.partialorder %v323, 0.0
        %v668 = vand.u32 %v323, 2147483648
        %v669 = vsel %vm667, %v668, %v666
        %v670 = vrsqrt.pop %v325
        %v671 = vmul.f32 %v670, %v325
        %v672 = vmul.f32 %v671, %v670
        %v673 = vmul.f32 0.5, %v672
        %v674 = vsub.f32 1.5, %v673
        %v675 = vmul.f32 %v670, %v674
        %v676 = vmul.f32 %v325, %v675
        %vm677 = vcmp.eq.f32.partialorder %v325, inf
        %v678 = vsel %vm677, %v325, %v676
        %vm679 = vcmp.eq.f32.partialorder %v325, 0.0
        %v680 = vand.u32 %v325, 2147483648
        %v681 = vsel %vm679, %v680, %v678
        %v682 = vrsqrt.pop %v327
        %v683 = vmul.f32 %v682, %v327
        %v684 = vmul.f32 %v683, %v682
        %v685 = vmul.f32 0.5, %v684
        %v686 = vsub.f32 1.5, %v685
        %v687 = vmul.f32 %v682, %v686
        %v688 = vmul.f32 %v327, %v687
        %vm689 = vcmp.eq.f32.partialorder %v327, inf
        %v690 = vsel %vm689, %v327, %v688
        %vm691 = vcmp.eq.f32.partialorder %v327, 0.0
        %v692 = vand.u32 %v327, 2147483648
        %v693 = vsel %vm691, %v692, %v690
        %v694 = vrsqrt.pop %v329
        %v695 = vmul.f32 %v694, %v329
        %v696 = vmul.f32 %v695, %v694
        %v697 = vmul.f32 0.5, %v696
        %v698 = vsub.f32 1.5, %v697
        %v699 = vmul.f32 %v694, %v698
        %v700 = vmul.f32 %v329, %v699
        %vm701 = vcmp.eq.f32.partialorder %v329, inf
        %v702 = vsel %vm701, %v329, %v700
        %vm703 = vcmp.eq.f32.partialorder %v329, 0.0
        %v704 = vand.u32 %v329, 2147483648
        %v705 = vsel %vm703, %v704, %v702
        %v706 = vrsqrt.pop %v331
        %v707 = vmul.f32 %v706, %v331
        %v708 = vmul.f32 %v707, %v706
        %v709 = vmul.f32 0.5, %v708
        %v710 = vsub.f32 1.5, %v709
        %v711 = vmul.f32 %v706, %v710
        %v712 = vmul.f32 %v331, %v711
        %vm713 = vcmp.eq.f32.partialorder %v331, inf
        %v714 = vsel %vm713, %v331, %v712
        %vm715 = vcmp.eq.f32.partialorder %v331, 0.0
        %v716 = vand.u32 %v331, 2147483648
        %v717 = vsel %vm715, %v716, %v714
        %v718 = vrsqrt.pop %v333
        %v719 = vmul.f32 %v718, %v333
        %v720 = vmul.f32 %v719, %v718
        %v721 = vmul.f32 0.5, %v720
        %v722 = vsub.f32 1.5, %v721
        %v723 = vmul.f32 %v718, %v722
        %v724 = vmul.f32 %v333, %v723
        %vm725 = vcmp.eq.f32.partialorder %v333, inf
        %v726 = vsel %vm725, %v333, %v724
        %vm727 = vcmp.eq.f32.partialorder %v333, 0.0
        %v728 = vand.u32 %v333, 2147483648
        %v729 = vsel %vm727, %v728, %v726
        %v730 = vrsqrt.pop %v335
        %v731 = vmul.f32 %v730, %v335
        %v732 = vmul.f32 %v731, %v730
        %v733 = vmul.f32 0.5, %v732
        %v734 = vsub.f32 1.5, %v733
        %v735 = vmul.f32 %v730, %v734
        %v736 = vmul.f32 %v335, %v735
        %vm737 = vcmp.eq.f32.partialorder %v335, inf
        %v738 = vsel %vm737, %v335, %v736
        %vm739 = vcmp.eq.f32.partialorder %v335, 0.0
        %v740 = vand.u32 %v335, 2147483648
        %v741 = vsel %vm739, %v740, %v738
        %v742 = vrsqrt.pop %v337
        %v743 = vmul.f32 %v742, %v337
        %v744 = vmul.f32 %v743, %v742
        %v745 = vmul.f32 0.5, %v744
        %v746 = vsub.f32 1.5, %v745
        %v747 = vmul.f32 %v742, %v746
        %v748 = vmul.f32 %v337, %v747
        %vm749 = vcmp.eq.f32.partialorder %v337, inf
        %v750 = vsel %vm749, %v337, %v748
        %vm751 = vcmp.eq.f32.partialorder %v337, 0.0
        %v752 = vand.u32 %v337, 2147483648
        %v753 = vsel %vm751, %v752, %v750
        %v754 = vrsqrt.pop %v339
        %v755 = vmul.f32 %v754, %v339
        %v756 = vmul.f32 %v755, %v754
        %v757 = vmul.f32 0.5, %v756
        %v758 = vsub.f32 1.5, %v757
        %v759 = vmul.f32 %v754, %v758
        %v760 = vmul.f32 %v339, %v759
        %vm761 = vcmp.eq.f32.partialorder %v339, inf
        %v762 = vsel %vm761, %v339, %v760
        %vm763 = vcmp.eq.f32.partialorder %v339, 0.0
        %v764 = vand.u32 %v339, 2147483648
        %v765 = vsel %vm763, %v764, %v762
        %v766 = vrsqrt.pop %v341
        %v767 = vmul.f32 %v766, %v341
        %v768 = vmul.f32 %v767, %v766
        %v769 = vmul.f32 0.5, %v768
        %v770 = vsub.f32 1.5, %v769
        %v771 = vmul.f32 %v766, %v770
        %v772 = vmul.f32 %v341, %v771
        %vm773 = vcmp.eq.f32.partialorder %v341, inf
        %v774 = vsel %vm773, %v341, %v772
        %vm775 = vcmp.eq.f32.partialorder %v341, 0.0
        %v776 = vand.u32 %v341, 2147483648
        %v777 = vsel %vm775, %v776, %v774
        %v778 = vrsqrt.pop %v343
        %v779 = vmul.f32 %v778, %v343
        %v780 = vmul.f32 %v779, %v778
        %v781 = vmul.f32 0.5, %v780
        %v782 = vsub.f32 1.5, %v781
        %v783 = vmul.f32 %v778, %v782
        %v784 = vmul.f32 %v343, %v783
        %vm785 = vcmp.eq.f32.partialorder %v343, inf
        %v786 = vsel %vm785, %v343, %v784
        %vm787 = vcmp.eq.f32.partialorder %v343, 0.0
        %v788 = vand.u32 %v343, 2147483648
        %v789 = vsel %vm787, %v788, %v786
        %v790 = vrsqrt.pop %v345
        %v791 = vmul.f32 %v790, %v345
        %v792 = vmul.f32 %v791, %v790
        %v793 = vmul.f32 0.5, %v792
        %v794 = vsub.f32 1.5, %v793
        %v795 = vmul.f32 %v790, %v794
        %v796 = vmul.f32 %v345, %v795
        %vm797 = vcmp.eq.f32.partialorder %v345, inf
        %v798 = vsel %vm797, %v345, %v796
        %vm799 = vcmp.eq.f32.partialorder %v345, 0.0
        %v800 = vand.u32 %v345, 2147483648
        %v801 = vsel %vm799, %v800, %v798
        %v802 = vrsqrt.pop %v347
        %v803 = vmul.f32 %v802, %v347
        %v804 = vmul.f32 %v803, %v802
        %v805 = vmul.f32 0.5, %v804
        %v806 = vsub.f32 1.5, %v805
        %v807 = vmul.f32 %v802, %v806
        %v808 = vmul.f32 %v347, %v807
        %vm809 = vcmp.eq.f32.partialorder %v347, inf
        %v810 = vsel %vm809, %v347, %v808
        %vm811 = vcmp.eq.f32.partialorder %v347, 0.0
        %v812 = vand.u32 %v347, 2147483648
        %v813 = vsel %vm811, %v812, %v810
        %v814 = vrsqrt.pop %v349
        %v815 = vmul.f32 %v814, %v349
        %v816 = vmul.f32 %v815, %v814
        %v817 = vmul.f32 0.5, %v816
        %v818 = vsub.f32 1.5, %v817
        %v819 = vmul.f32 %v814, %v818
        %v820 = vmul.f32 %v349, %v819
        %vm821 = vcmp.eq.f32.partialorder %v349, inf
        %v822 = vsel %vm821, %v349, %v820
        %vm823 = vcmp.eq.f32.partialorder %v349, 0.0
        %v824 = vand.u32 %v349, 2147483648
        %v825 = vsel %vm823, %v824, %v822
        %v826 = vrsqrt.pop %v351
        %v827 = vmul.f32 %v826, %v351
        %v828 = vmul.f32 %v827, %v826
        %v829 = vmul.f32 0.5, %v828
        %v830 = vsub.f32 1.5, %v829
        %v831 = vmul.f32 %v826, %v830
        %v832 = vmul.f32 %v351, %v831
        %vm833 = vcmp.eq.f32.partialorder %v351, inf
        %v834 = vsel %vm833, %v351, %v832
        %vm835 = vcmp.eq.f32.partialorder %v351, 0.0
        %v836 = vand.u32 %v351, 2147483648
        %v837 = vsel %vm835, %v836, %v834
        %v838 = vrsqrt.pop %v353
        %v839 = vmul.f32 %v838, %v353
        %v840 = vmul.f32 %v839, %v838
        %v841 = vmul.f32 0.5, %v840
        %v842 = vsub.f32 1.5, %v841
        %v843 = vmul.f32 %v838, %v842
        %v844 = vmul.f32 %v353, %v843
        %vm845 = vcmp.eq.f32.partialorder %v353, inf
        %v846 = vsel %vm845, %v353, %v844
        %vm847 = vcmp.eq.f32.partialorder %v353, 0.0
        %v848 = vand.u32 %v353, 2147483648
        %v849 = vsel %vm847, %v848, %v846
        %v850 = vrsqrt.pop %v355
        %v851 = vmul.f32 %v850, %v355
        %v852 = vmul.f32 %v851, %v850
        %v853 = vmul.f32 0.5, %v852
        %v854 = vsub.f32 1.5, %v853
        %v855 = vmul.f32 %v850, %v854
        %v856 = vmul.f32 %v355, %v855
        %vm857 = vcmp.eq.f32.partialorder %v355, inf
        %v858 = vsel %vm857, %v355, %v856
        %vm859 = vcmp.eq.f32.partialorder %v355, 0.0
        %v860 = vand.u32 %v355, 2147483648
        %v861 = vsel %vm859, %v860, %v858
        %v862 = vrsqrt.pop %v357
        %v863 = vmul.f32 %v862, %v357
        %v864 = vmul.f32 %v863, %v862
        %v865 = vmul.f32 0.5, %v864
        %v866 = vsub.f32 1.5, %v865
        %v867 = vmul.f32 %v862, %v866
        %v868 = vmul.f32 %v357, %v867
        %vm869 = vcmp.eq.f32.partialorder %v357, inf
        %v870 = vsel %vm869, %v357, %v868
        %vm871 = vcmp.eq.f32.partialorder %v357, 0.0
        %v872 = vand.u32 %v357, 2147483648
        %v873 = vsel %vm871, %v872, %v870
        %v874 = vrsqrt.pop %v359
        %v875 = vmul.f32 %v874, %v359
        %v876 = vmul.f32 %v875, %v874
        %v877 = vmul.f32 0.5, %v876
        %v878 = vsub.f32 1.5, %v877
        %v879 = vmul.f32 %v874, %v878
        %v880 = vmul.f32 %v359, %v879
        %vm881 = vcmp.eq.f32.partialorder %v359, inf
        %v882 = vsel %vm881, %v359, %v880
        %vm883 = vcmp.eq.f32.partialorder %v359, 0.0
        %v884 = vand.u32 %v359, 2147483648
        %v885 = vsel %vm883, %v884, %v882
        %v886 = vrsqrt.pop %v361
        %v887 = vmul.f32 %v886, %v361
        %v888 = vmul.f32 %v887, %v886
        %v889 = vmul.f32 0.5, %v888
        %v890 = vsub.f32 1.5, %v889
        %v891 = vmul.f32 %v886, %v890
        %v892 = vmul.f32 %v361, %v891
        %vm893 = vcmp.eq.f32.partialorder %v361, inf
        %v894 = vsel %vm893, %v361, %v892
        %vm895 = vcmp.eq.f32.partialorder %v361, 0.0
        %v896 = vand.u32 %v361, 2147483648
        %v897 = vsel %vm895, %v896, %v894
        %v898 = vrsqrt.pop %v363
        %v899 = vmul.f32 %v898, %v363
        %v900 = vmul.f32 %v899, %v898
        %v901 = vmul.f32 0.5, %v900
        %v902 = vsub.f32 1.5, %v901
        %v903 = vmul.f32 %v898, %v902
        %v904 = vmul.f32 %v363, %v903
        %vm905 = vcmp.eq.f32.partialorder %v363, inf
        %v906 = vsel %vm905, %v363, %v904
        %vm907 = vcmp.eq.f32.partialorder %v363, 0.0
        %v908 = vand.u32 %v363, 2147483648
        %v909 = vsel %vm907, %v908, %v906
        %v910 = vrsqrt.pop %v365
        %v911 = vmul.f32 %v910, %v365
        %v912 = vmul.f32 %v911, %v910
        %v913 = vmul.f32 0.5, %v912
        %v914 = vsub.f32 1.5, %v913
        %v915 = vmul.f32 %v910, %v914
        %v916 = vmul.f32 %v365, %v915
        %vm917 = vcmp.eq.f32.partialorder %v365, inf
        %v918 = vsel %vm917, %v365, %v916
        %vm919 = vcmp.eq.f32.partialorder %v365, 0.0
        %v920 = vand.u32 %v365, 2147483648
        %v921 = vsel %vm919, %v920, %v918
        %v922 = vrsqrt.pop %v367
        %v923 = vmul.f32 %v922, %v367
        %v924 = vmul.f32 %v923, %v922
        %v925 = vmul.f32 0.5, %v924
        %v926 = vsub.f32 1.5, %v925
        %v927 = vmul.f32 %v922, %v926
        %v928 = vmul.f32 %v367, %v927
        %vm929 = vcmp.eq.f32.partialorder %v367, inf
        %v930 = vsel %vm929, %v367, %v928
        %vm931 = vcmp.eq.f32.partialorder %v367, 0.0
        %v932 = vand.u32 %v367, 2147483648
        %v933 = vsel %vm931, %v932, %v930
        %v934 = vrsqrt.pop %v369
        %v935 = vmul.f32 %v934, %v369
        %v936 = vmul.f32 %v935, %v934
        %v937 = vmul.f32 0.5, %v936
        %v938 = vsub.f32 1.5, %v937
        %v939 = vmul.f32 %v934, %v938
        %v940 = vmul.f32 %v369, %v939
        %vm941 = vcmp.eq.f32.partialorder %v369, inf
        %v942 = vsel %vm941, %v369, %v940
        %vm943 = vcmp.eq.f32.partialorder %v369, 0.0
        %v944 = vand.u32 %v369, 2147483648
        %v945 = vsel %vm943, %v944, %v942
        %v946 = vmax.f32 %v381, 1e-12
        %v947 = vmax.f32 %v393, 1e-12
        %v948 = vmax.f32 %v405, 1e-12
        %v949 = vmax.f32 %v417, 1e-12
        %v950 = vmax.f32 %v429, 1e-12
        %v951 = vmax.f32 %v441, 1e-12
        %v952 = vmax.f32 %v453, 1e-12
        %v953 = vmax.f32 %v465, 1e-12
        %v954 = vmax.f32 %v477, 1e-12
        %v955 = vmax.f32 %v489, 1e-12
        %v956 = vmax.f32 %v501, 1e-12
        %v957 = vmax.f32 %v513, 1e-12
        %v958 = vmax.f32 %v525, 1e-12
        %v959 = vmax.f32 %v537, 1e-12
        %v960 = vmax.f32 %v549, 1e-12
        %v961 = vmax.f32 %v561, 1e-12
        %v962 = vmax.f32 %v573, 1e-12
        %v963 = vmax.f32 %v585, 1e-12
        %v964 = vmax.f32 %v597, 1e-12
        %v965 = vmax.f32 %v609, 1e-12
        %v966 = vmax.f32 %v621, 1e-12
        %v967 = vmax.f32 %v633, 1e-12
        %v968 = vmax.f32 %v645, 1e-12
        %v969 = vmax.f32 %v657, 1e-12
        %v970 = vmax.f32 %v669, 1e-12
        %v971 = vmax.f32 %v681, 1e-12
        %v972 = vmax.f32 %v693, 1e-12
        %v973 = vmax.f32 %v705, 1e-12
        %v974 = vmax.f32 %v717, 1e-12
        %v975 = vmax.f32 %v729, 1e-12
        %v976 = vmax.f32 %v741, 1e-12
        %v977 = vmax.f32 %v753, 1e-12
        %v978 = vmax.f32 %v765, 1e-12
        %v979 = vmax.f32 %v777, 1e-12
        %v980 = vmax.f32 %v789, 1e-12
        %v981 = vmax.f32 %v801, 1e-12
        %v982 = vmax.f32 %v813, 1e-12
        %v983 = vmax.f32 %v825, 1e-12
        %v984 = vmax.f32 %v837, 1e-12
        %v985 = vmax.f32 %v849, 1e-12
        %v986 = vmax.f32 %v861, 1e-12
        %v987 = vmax.f32 %v873, 1e-12
        %v988 = vmax.f32 %v885, 1e-12
        %v989 = vmax.f32 %v897, 1e-12
        %v990 = vmax.f32 %v909, 1e-12
        %v991 = vmax.f32 %v921, 1e-12
        %v992 = vmax.f32 %v933, 1e-12
        %v993 = vmax.f32 %v945, 1e-12
        %v994 = vrcp.pop %v946
        %v995 = vmul.f32 %v946, %v994
        %v996 = vsub.f32 1.0, %v995
        %v997 = vmul.f32 %v994, %v996
        %v998 = vadd.f32 %v994, %v997
        %vm999 = vweird.f32 %v946
        %vm1000 = vweird.f32 %v994
        %vm1001 = vmor %vm999, %vm1000
        %v1002 = vsel %vm1001, %v994, %v998
        %v1003 = vand.u32 2147483647, %v946
        %vm1004 = vcmp.eq.f32.partialorder %v1003, 8.507059e+37
        %v1005 = vand.u32 %v946, 2147483648
        %v1006 = vor.u32 1.1754944e-38, %v1005
        %v1007 = vsel %vm1004, %v1006, %v1002
        %v1008 = vmul.f32 %v178, %v1007
        %v1009 = vrcp.pop %v947
        %v1010 = vmul.f32 %v947, %v1009
        %v1011 = vsub.f32 1.0, %v1010
        %v1012 = vmul.f32 %v1009, %v1011
        %v1013 = vadd.f32 %v1009, %v1012
        %vm1014 = vweird.f32 %v947
        %vm1015 = vweird.f32 %v1009
        %vm1016 = vmor %vm1014, %vm1015
        %v1017 = vsel %vm1016, %v1009, %v1013
        %v1018 = vand.u32 2147483647, %v947
        %vm1019 = vcmp.eq.f32.partialorder %v1018, 8.507059e+37
        %v1020 = vand.u32 %v947, 2147483648
        %v1021 = vor.u32 1.1754944e-38, %v1020
        %v1022 = vsel %vm1019, %v1021, %v1017
        %v1023 = vmul.f32 %v179, %v1022
        %v1024 = vrcp.pop %v948
        %v1025 = vmul.f32 %v948, %v1024
        %v1026 = vsub.f32 1.0, %v1025
        %v1027 = vmul.f32 %v1024, %v1026
        %v1028 = vadd.f32 %v1024, %v1027
        %vm1029 = vweird.f32 %v948
        %vm1030 = vweird.f32 %v1024
        %vm1031 = vmor %vm1029, %vm1030
        %v1032 = vsel %vm1031, %v1024, %v1028
        %v1033 = vand.u32 2147483647, %v948
        %vm1034 = vcmp.eq.f32.partialorder %v1033, 8.507059e+37
        %v1035 = vand.u32 %v948, 2147483648
        %v1036 = vor.u32 1.1754944e-38, %v1035
        %v1037 = vsel %vm1034, %v1036, %v1032
        %v1038 = vmul.f32 %v180, %v1037
        %v1039 = vrcp.pop %v949
        %v1040 = vmul.f32 %v949, %v1039
        %v1041 = vsub.f32 1.0, %v1040
        %v1042 = vmul.f32 %v1039, %v1041
        %v1043 = vadd.f32 %v1039, %v1042
        %vm1044 = vweird.f32 %v949
        %vm1045 = vweird.f32 %v1039
        %vm1046 = vmor %vm1044, %vm1045
        %v1047 = vsel %vm1046, %v1039, %v1043
        %v1048 = vand.u32 2147483647, %v949
        %vm1049 = vcmp.eq.f32.partialorder %v1048, 8.507059e+37
        %v1050 = vand.u32 %v949, 2147483648
        %v1051 = vor.u32 1.1754944e-38, %v1050
        %v1052 = vsel %vm1049, %v1051, %v1047
        %v1053 = vmul.f32 %v181, %v1052
        %v1054 = vrcp.pop %v950
        %v1055 = vmul.f32 %v950, %v1054
        %v1056 = vsub.f32 1.0, %v1055
        %v1057 = vmul.f32 %v1054, %v1056
        %v1058 = vadd.f32 %v1054, %v1057
        %vm1059 = vweird.f32 %v950
        %vm1060 = vweird.f32 %v1054
        %vm1061 = vmor %vm1059, %vm1060
        %v1062 = vsel %vm1061, %v1054, %v1058
        %v1063 = vand.u32 2147483647, %v950
        %vm1064 = vcmp.eq.f32.partialorder %v1063, 8.507059e+37
        %v1065 = vand.u32 %v950, 2147483648
        %v1066 = vor.u32 1.1754944e-38, %v1065
        %v1067 = vsel %vm1064, %v1066, %v1062
        %v1068 = vmul.f32 %v182, %v1067
        %v1069 = vrcp.pop %v951
        %v1070 = vmul.f32 %v951, %v1069
        %v1071 = vsub.f32 1.0, %v1070
        %v1072 = vmul.f32 %v1069, %v1071
        %v1073 = vadd.f32 %v1069, %v1072
        %vm1074 = vweird.f32 %v951
        %vm1075 = vweird.f32 %v1069
        %vm1076 = vmor %vm1074, %vm1075
        %v1077 = vsel %vm1076, %v1069, %v1073
        %v1078 = vand.u32 2147483647, %v951
        %vm1079 = vcmp.eq.f32.partialorder %v1078, 8.507059e+37
        %v1080 = vand.u32 %v951, 2147483648
        %v1081 = vor.u32 1.1754944e-38, %v1080
        %v1082 = vsel %vm1079, %v1081, %v1077
        %v1083 = vmul.f32 %v183, %v1082
        %v1084 = vrcp.pop %v952
        %v1085 = vmul.f32 %v952, %v1084
        %v1086 = vsub.f32 1.0, %v1085
        %v1087 = vmul.f32 %v1084, %v1086
        %v1088 = vadd.f32 %v1084, %v1087
        %vm1089 = vweird.f32 %v952
        %vm1090 = vweird.f32 %v1084
        %vm1091 = vmor %vm1089, %vm1090
        %v1092 = vsel %vm1091, %v1084, %v1088
        %v1093 = vand.u32 2147483647, %v952
        %vm1094 = vcmp.eq.f32.partialorder %v1093, 8.507059e+37
        %v1095 = vand.u32 %v952, 2147483648
        %v1096 = vor.u32 1.1754944e-38, %v1095
        %v1097 = vsel %vm1094, %v1096, %v1092
        %v1098 = vmul.f32 %v184, %v1097
        %v1099 = vrcp.pop %v953
        %v1100 = vmul.f32 %v953, %v1099
        %v1101 = vsub.f32 1.0, %v1100
        %v1102 = vmul.f32 %v1099, %v1101
        %v1103 = vadd.f32 %v1099, %v1102
        %vm1104 = vweird.f32 %v953
        %vm1105 = vweird.f32 %v1099
        %vm1106 = vmor %vm1104, %vm1105
        %v1107 = vsel %vm1106, %v1099, %v1103
        %v1108 = vand.u32 2147483647, %v953
        %vm1109 = vcmp.eq.f32.partialorder %v1108, 8.507059e+37
        %v1110 = vand.u32 %v953, 2147483648
        %v1111 = vor.u32 1.1754944e-38, %v1110
        %v1112 = vsel %vm1109, %v1111, %v1107
        %v1113 = vmul.f32 %v185, %v1112
        %v1114 = vrcp.pop %v954
        %v1115 = vmul.f32 %v954, %v1114
        %v1116 = vsub.f32 1.0, %v1115
        %v1117 = vmul.f32 %v1114, %v1116
        %v1118 = vadd.f32 %v1114, %v1117
        %vm1119 = vweird.f32 %v954
        %vm1120 = vweird.f32 %v1114
        %vm1121 = vmor %vm1119, %vm1120
        %v1122 = vsel %vm1121, %v1114, %v1118
        %v1123 = vand.u32 2147483647, %v954
        %vm1124 = vcmp.eq.f32.partialorder %v1123, 8.507059e+37
        %v1125 = vand.u32 %v954, 2147483648
        %v1126 = vor.u32 1.1754944e-38, %v1125
        %v1127 = vsel %vm1124, %v1126, %v1122
        %v1128 = vmul.f32 %v186, %v1127
        %v1129 = vrcp.pop %v955
        %v1130 = vmul.f32 %v955, %v1129
        %v1131 = vsub.f32 1.0, %v1130
        %v1132 = vmul.f32 %v1129, %v1131
        %v1133 = vadd.f32 %v1129, %v1132
        %vm1134 = vweird.f32 %v955
        %vm1135 = vweird.f32 %v1129
        %vm1136 = vmor %vm1134, %vm1135
        %v1137 = vsel %vm1136, %v1129, %v1133
        %v1138 = vand.u32 2147483647, %v955
        %vm1139 = vcmp.eq.f32.partialorder %v1138, 8.507059e+37
        %v1140 = vand.u32 %v955, 2147483648
        %v1141 = vor.u32 1.1754944e-38, %v1140
        %v1142 = vsel %vm1139, %v1141, %v1137
        %v1143 = vmul.f32 %v187, %v1142
        %v1144 = vrcp.pop %v956
        %v1145 = vmul.f32 %v956, %v1144
        %v1146 = vsub.f32 1.0, %v1145
        %v1147 = vmul.f32 %v1144, %v1146
        %v1148 = vadd.f32 %v1144, %v1147
        %vm1149 = vweird.f32 %v956
        %vm1150 = vweird.f32 %v1144
        %vm1151 = vmor %vm1149, %vm1150
        %v1152 = vsel %vm1151, %v1144, %v1148
        %v1153 = vand.u32 2147483647, %v956
        %vm1154 = vcmp.eq.f32.partialorder %v1153, 8.507059e+37
        %v1155 = vand.u32 %v956, 2147483648
        %v1156 = vor.u32 1.1754944e-38, %v1155
        %v1157 = vsel %vm1154, %v1156, %v1152
        %v1158 = vmul.f32 %v188, %v1157
        %v1159 = vrcp.pop %v957
        %v1160 = vmul.f32 %v957, %v1159
        %v1161 = vsub.f32 1.0, %v1160
        %v1162 = vmul.f32 %v1159, %v1161
        %v1163 = vadd.f32 %v1159, %v1162
        %vm1164 = vweird.f32 %v957
        %vm1165 = vweird.f32 %v1159
        %vm1166 = vmor %vm1164, %vm1165
        %v1167 = vsel %vm1166, %v1159, %v1163
        %v1168 = vand.u32 2147483647, %v957
        %vm1169 = vcmp.eq.f32.partialorder %v1168, 8.507059e+37
        %v1170 = vand.u32 %v957, 2147483648
        %v1171 = vor.u32 1.1754944e-38, %v1170
        %v1172 = vsel %vm1169, %v1171, %v1167
        %v1173 = vmul.f32 %v189, %v1172
        %v1174 = vrcp.pop %v958
        %v1175 = vmul.f32 %v958, %v1174
        %v1176 = vsub.f32 1.0, %v1175
        %v1177 = vmul.f32 %v1174, %v1176
        %v1178 = vadd.f32 %v1174, %v1177
        %vm1179 = vweird.f32 %v958
        %vm1180 = vweird.f32 %v1174
        %vm1181 = vmor %vm1179, %vm1180
        %v1182 = vsel %vm1181, %v1174, %v1178
        %v1183 = vand.u32 2147483647, %v958
        %vm1184 = vcmp.eq.f32.partialorder %v1183, 8.507059e+37
        %v1185 = vand.u32 %v958, 2147483648
        %v1186 = vor.u32 1.1754944e-38, %v1185
        %v1187 = vsel %vm1184, %v1186, %v1182
        %v1188 = vmul.f32 %v190, %v1187
        %v1189 = vrcp.pop %v959
        %v1190 = vmul.f32 %v959, %v1189
        %v1191 = vsub.f32 1.0, %v1190
        %v1192 = vmul.f32 %v1189, %v1191
        %v1193 = vadd.f32 %v1189, %v1192
        %vm1194 = vweird.f32 %v959
        %vm1195 = vweird.f32 %v1189
        %vm1196 = vmor %vm1194, %vm1195
        %v1197 = vsel %vm1196, %v1189, %v1193
        %v1198 = vand.u32 2147483647, %v959
        %vm1199 = vcmp.eq.f32.partialorder %v1198, 8.507059e+37
        %v1200 = vand.u32 %v959, 2147483648
        %v1201 = vor.u32 1.1754944e-38, %v1200
        %v1202 = vsel %vm1199, %v1201, %v1197
        %v1203 = vmul.f32 %v191, %v1202
        %v1204 = vrcp.pop %v960
        %v1205 = vmul.f32 %v960, %v1204
        %v1206 = vsub.f32 1.0, %v1205
        %v1207 = vmul.f32 %v1204, %v1206
        %v1208 = vadd.f32 %v1204, %v1207
        %vm1209 = vweird.f32 %v960
        %vm1210 = vweird.f32 %v1204
        %vm1211 = vmor %vm1209, %vm1210
        %v1212 = vsel %vm1211, %v1204, %v1208
        %v1213 = vand.u32 2147483647, %v960
        %vm1214 = vcmp.eq.f32.partialorder %v1213, 8.507059e+37
        %v1215 = vand.u32 %v960, 2147483648
        %v1216 = vor.u32 1.1754944e-38, %v1215
        %v1217 = vsel %vm1214, %v1216, %v1212
        %v1218 = vmul.f32 %v192, %v1217
        %v1219 = vrcp.pop %v961
        %v1220 = vmul.f32 %v961, %v1219
        %v1221 = vsub.f32 1.0, %v1220
        %v1222 = vmul.f32 %v1219, %v1221
        %v1223 = vadd.f32 %v1219, %v1222
        %vm1224 = vweird.f32 %v961
        %vm1225 = vweird.f32 %v1219
        %vm1226 = vmor %vm1224, %vm1225
        %v1227 = vsel %vm1226, %v1219, %v1223
        %v1228 = vand.u32 2147483647, %v961
        %vm1229 = vcmp.eq.f32.partialorder %v1228, 8.507059e+37
        %v1230 = vand.u32 %v961, 2147483648
        %v1231 = vor.u32 1.1754944e-38, %v1230
        %v1232 = vsel %vm1229, %v1231, %v1227
        %v1233 = vmul.f32 %v193, %v1232
        %v1234 = vrcp.pop %v962
        %v1235 = vmul.f32 %v962, %v1234
        %v1236 = vsub.f32 1.0, %v1235
        %v1237 = vmul.f32 %v1234, %v1236
        %v1238 = vadd.f32 %v1234, %v1237
        %vm1239 = vweird.f32 %v962
        %vm1240 = vweird.f32 %v1234
        %vm1241 = vmor %vm1239, %vm1240
        %v1242 = vsel %vm1241, %v1234, %v1238
        %v1243 = vand.u32 2147483647, %v962
        %vm1244 = vcmp.eq.f32.partialorder %v1243, 8.507059e+37
        %v1245 = vand.u32 %v962, 2147483648
        %v1246 = vor.u32 1.1754944e-38, %v1245
        %v1247 = vsel %vm1244, %v1246, %v1242
        %v1248 = vmul.f32 %v194, %v1247
        %v1249 = vrcp.pop %v963
        %v1250 = vmul.f32 %v963, %v1249
        %v1251 = vsub.f32 1.0, %v1250
        %v1252 = vmul.f32 %v1249, %v1251
        %v1253 = vadd.f32 %v1249, %v1252
        %vm1254 = vweird.f32 %v963
        %vm1255 = vweird.f32 %v1249
        %vm1256 = vmor %vm1254, %vm1255
        %v1257 = vsel %vm1256, %v1249, %v1253
        %v1258 = vand.u32 2147483647, %v963
        %vm1259 = vcmp.eq.f32.partialorder %v1258, 8.507059e+37
        %v1260 = vand.u32 %v963, 2147483648
        %v1261 = vor.u32 1.1754944e-38, %v1260
        %v1262 = vsel %vm1259, %v1261, %v1257
        %v1263 = vmul.f32 %v195, %v1262
        %v1264 = vrcp.pop %v964
        %v1265 = vmul.f32 %v964, %v1264
        %v1266 = vsub.f32 1.0, %v1265
        %v1267 = vmul.f32 %v1264, %v1266
        %v1268 = vadd.f32 %v1264, %v1267
        %vm1269 = vweird.f32 %v964
        %vm1270 = vweird.f32 %v1264
        %vm1271 = vmor %vm1269, %vm1270
        %v1272 = vsel %vm1271, %v1264, %v1268
        %v1273 = vand.u32 2147483647, %v964
        %vm1274 = vcmp.eq.f32.partialorder %v1273, 8.507059e+37
        %v1275 = vand.u32 %v964, 2147483648
        %v1276 = vor.u32 1.1754944e-38, %v1275
        %v1277 = vsel %vm1274, %v1276, %v1272
        %v1278 = vmul.f32 %v196, %v1277
        %v1279 = vrcp.pop %v965
        %v1280 = vmul.f32 %v965, %v1279
        %v1281 = vsub.f32 1.0, %v1280
        %v1282 = vmul.f32 %v1279, %v1281
        %v1283 = vadd.f32 %v1279, %v1282
        %vm1284 = vweird.f32 %v965
        %vm1285 = vweird.f32 %v1279
        %vm1286 = vmor %vm1284, %vm1285
        %v1287 = vsel %vm1286, %v1279, %v1283
        %v1288 = vand.u32 2147483647, %v965
        %vm1289 = vcmp.eq.f32.partialorder %v1288, 8.507059e+37
        %v1290 = vand.u32 %v965, 2147483648
        %v1291 = vor.u32 1.1754944e-38, %v1290
        %v1292 = vsel %vm1289, %v1291, %v1287
        %v1293 = vmul.f32 %v197, %v1292
        %v1294 = vrcp.pop %v966
        %v1295 = vmul.f32 %v966, %v1294
        %v1296 = vsub.f32 1.0, %v1295
        %v1297 = vmul.f32 %v1294, %v1296
        %v1298 = vadd.f32 %v1294, %v1297
        %vm1299 = vweird.f32 %v966
        %vm1300 = vweird.f32 %v1294
        %vm1301 = vmor %vm1299, %vm1300
        %v1302 = vsel %vm1301, %v1294, %v1298
        %v1303 = vand.u32 2147483647, %v966
        %vm1304 = vcmp.eq.f32.partialorder %v1303, 8.507059e+37
        %v1305 = vand.u32 %v966, 2147483648
        %v1306 = vor.u32 1.1754944e-38, %v1305
        %v1307 = vsel %vm1304, %v1306, %v1302
        %v1308 = vmul.f32 %v198, %v1307
        %v1309 = vrcp.pop %v967
        %v1310 = vmul.f32 %v967, %v1309
        %v1311 = vsub.f32 1.0, %v1310
        %v1312 = vmul.f32 %v1309, %v1311
        %v1313 = vadd.f32 %v1309, %v1312
        %vm1314 = vweird.f32 %v967
        %vm1315 = vweird.f32 %v1309
        %vm1316 = vmor %vm1314, %vm1315
        %v1317 = vsel %vm1316, %v1309, %v1313
        %v1318 = vand.u32 2147483647, %v967
        %vm1319 = vcmp.eq.f32.partialorder %v1318, 8.507059e+37
        %v1320 = vand.u32 %v967, 2147483648
        %v1321 = vor.u32 1.1754944e-38, %v1320
        %v1322 = vsel %vm1319, %v1321, %v1317
        %v1323 = vmul.f32 %v199, %v1322
        %v1324 = vrcp.pop %v968
        %v1325 = vmul.f32 %v968, %v1324
        %v1326 = vsub.f32 1.0, %v1325
        %v1327 = vmul.f32 %v1324, %v1326
        %v1328 = vadd.f32 %v1324, %v1327
        %vm1329 = vweird.f32 %v968
        %vm1330 = vweird.f32 %v1324
        %vm1331 = vmor %vm1329, %vm1330
        %v1332 = vsel %vm1331, %v1324, %v1328
        %v1333 = vand.u32 2147483647, %v968
        %vm1334 = vcmp.eq.f32.partialorder %v1333, 8.507059e+37
        %v1335 = vand.u32 %v968, 2147483648
        %v1336 = vor.u32 1.1754944e-38, %v1335
        %v1337 = vsel %vm1334, %v1336, %v1332
        %v1338 = vmul.f32 %v200, %v1337
        %v1339 = vrcp.pop %v969
        %v1340 = vmul.f32 %v969, %v1339
        %v1341 = vsub.f32 1.0, %v1340
        %v1342 = vmul.f32 %v1339, %v1341
        %v1343 = vadd.f32 %v1339, %v1342
        %vm1344 = vweird.f32 %v969
        %vm1345 = vweird.f32 %v1339
        %vm1346 = vmor %vm1344, %vm1345
        %v1347 = vsel %vm1346, %v1339, %v1343
        %v1348 = vand.u32 2147483647, %v969
        %vm1349 = vcmp.eq.f32.partialorder %v1348, 8.507059e+37
        %v1350 = vand.u32 %v969, 2147483648
        %v1351 = vor.u32 1.1754944e-38, %v1350
        %v1352 = vsel %vm1349, %v1351, %v1347
        %v1353 = vmul.f32 %v201, %v1352
        %v1354 = vrcp.pop %v970
        %v1355 = vmul.f32 %v970, %v1354
        %v1356 = vsub.f32 1.0, %v1355
        %v1357 = vmul.f32 %v1354, %v1356
        %v1358 = vadd.f32 %v1354, %v1357
        %vm1359 = vweird.f32 %v970
        %vm1360 = vweird.f32 %v1354
        %vm1361 = vmor %vm1359, %vm1360
        %v1362 = vsel %vm1361, %v1354, %v1358
        %v1363 = vand.u32 2147483647, %v970
        %vm1364 = vcmp.eq.f32.partialorder %v1363, 8.507059e+37
        %v1365 = vand.u32 %v970, 2147483648
        %v1366 = vor.u32 1.1754944e-38, %v1365
        %v1367 = vsel %vm1364, %v1366, %v1362
        %v1368 = vmul.f32 %v202, %v1367
        %v1369 = vrcp.pop %v971
        %v1370 = vmul.f32 %v971, %v1369
        %v1371 = vsub.f32 1.0, %v1370
        %v1372 = vmul.f32 %v1369, %v1371
        %v1373 = vadd.f32 %v1369, %v1372
        %vm1374 = vweird.f32 %v971
        %vm1375 = vweird.f32 %v1369
        %vm1376 = vmor %vm1374, %vm1375
        %v1377 = vsel %vm1376, %v1369, %v1373
        %v1378 = vand.u32 2147483647, %v971
        %vm1379 = vcmp.eq.f32.partialorder %v1378, 8.507059e+37
        %v1380 = vand.u32 %v971, 2147483648
        %v1381 = vor.u32 1.1754944e-38, %v1380
        %v1382 = vsel %vm1379, %v1381, %v1377
        %v1383 = vmul.f32 %v203, %v1382
        %v1384 = vrcp.pop %v972
        %v1385 = vmul.f32 %v972, %v1384
        %v1386 = vsub.f32 1.0, %v1385
        %v1387 = vmul.f32 %v1384, %v1386
        %v1388 = vadd.f32 %v1384, %v1387
        %vm1389 = vweird.f32 %v972
        %vm1390 = vweird.f32 %v1384
        %vm1391 = vmor %vm1389, %vm1390
        %v1392 = vsel %vm1391, %v1384, %v1388
        %v1393 = vand.u32 2147483647, %v972
        %vm1394 = vcmp.eq.f32.partialorder %v1393, 8.507059e+37
        %v1395 = vand.u32 %v972, 2147483648
        %v1396 = vor.u32 1.1754944e-38, %v1395
        %v1397 = vsel %vm1394, %v1396, %v1392
        %v1398 = vmul.f32 %v204, %v1397
        %v1399 = vrcp.pop %v973
        %v1400 = vmul.f32 %v973, %v1399
        %v1401 = vsub.f32 1.0, %v1400
        %v1402 = vmul.f32 %v1399, %v1401
        %v1403 = vadd.f32 %v1399, %v1402
        %vm1404 = vweird.f32 %v973
        %vm1405 = vweird.f32 %v1399
        %vm1406 = vmor %vm1404, %vm1405
        %v1407 = vsel %vm1406, %v1399, %v1403
        %v1408 = vand.u32 2147483647, %v973
        %vm1409 = vcmp.eq.f32.partialorder %v1408, 8.507059e+37
        %v1410 = vand.u32 %v973, 2147483648
        %v1411 = vor.u32 1.1754944e-38, %v1410
        %v1412 = vsel %vm1409, %v1411, %v1407
        %v1413 = vmul.f32 %v205, %v1412
        %v1414 = vrcp.pop %v974
        %v1415 = vmul.f32 %v974, %v1414
        %v1416 = vsub.f32 1.0, %v1415
        %v1417 = vmul.f32 %v1414, %v1416
        %v1418 = vadd.f32 %v1414, %v1417
        %vm1419 = vweird.f32 %v974
        %vm1420 = vweird.f32 %v1414
        %vm1421 = vmor %vm1419, %vm1420
        %v1422 = vsel %vm1421, %v1414, %v1418
        %v1423 = vand.u32 2147483647, %v974
        %vm1424 = vcmp.eq.f32.partialorder %v1423, 8.507059e+37
        %v1425 = vand.u32 %v974, 2147483648
        %v1426 = vor.u32 1.1754944e-38, %v1425
        %v1427 = vsel %vm1424, %v1426, %v1422
        %v1428 = vmul.f32 %v206, %v1427
        %v1429 = vrcp.pop %v975
        %v1430 = vmul.f32 %v975, %v1429
        %v1431 = vsub.f32 1.0, %v1430
        %v1432 = vmul.f32 %v1429, %v1431
        %v1433 = vadd.f32 %v1429, %v1432
        %vm1434 = vweird.f32 %v975
        %vm1435 = vweird.f32 %v1429
        %vm1436 = vmor %vm1434, %vm1435
        %v1437 = vsel %vm1436, %v1429, %v1433
        %v1438 = vand.u32 2147483647, %v975
        %vm1439 = vcmp.eq.f32.partialorder %v1438, 8.507059e+37
        %v1440 = vand.u32 %v975, 2147483648
        %v1441 = vor.u32 1.1754944e-38, %v1440
        %v1442 = vsel %vm1439, %v1441, %v1437
        %v1443 = vmul.f32 %v207, %v1442
        %v1444 = vrcp.pop %v976
        %v1445 = vmul.f32 %v976, %v1444
        %v1446 = vsub.f32 1.0, %v1445
        %v1447 = vmul.f32 %v1444, %v1446
        %v1448 = vadd.f32 %v1444, %v1447
        %vm1449 = vweird.f32 %v976
        %vm1450 = vweird.f32 %v1444
        %vm1451 = vmor %vm1449, %vm1450
        %v1452 = vsel %vm1451, %v1444, %v1448
        %v1453 = vand.u32 2147483647, %v976
        %vm1454 = vcmp.eq.f32.partialorder %v1453, 8.507059e+37
        %v1455 = vand.u32 %v976, 2147483648
        %v1456 = vor.u32 1.1754944e-38, %v1455
        %v1457 = vsel %vm1454, %v1456, %v1452
        %v1458 = vmul.f32 %v208, %v1457
        %v1459 = vrcp.pop %v977
        %v1460 = vmul.f32 %v977, %v1459
        %v1461 = vsub.f32 1.0, %v1460
        %v1462 = vmul.f32 %v1459, %v1461
        %v1463 = vadd.f32 %v1459, %v1462
        %vm1464 = vweird.f32 %v977
        %vm1465 = vweird.f32 %v1459
        %vm1466 = vmor %vm1464, %vm1465
        %v1467 = vsel %vm1466, %v1459, %v1463
        %v1468 = vand.u32 2147483647, %v977
        %vm1469 = vcmp.eq.f32.partialorder %v1468, 8.507059e+37
        %v1470 = vand.u32 %v977, 2147483648
        %v1471 = vor.u32 1.1754944e-38, %v1470
        %v1472 = vsel %vm1469, %v1471, %v1467
        %v1473 = vmul.f32 %v209, %v1472
        %v1474 = vrcp.pop %v978
        %v1475 = vmul.f32 %v978, %v1474
        %v1476 = vsub.f32 1.0, %v1475
        %v1477 = vmul.f32 %v1474, %v1476
        %v1478 = vadd.f32 %v1474, %v1477
        %vm1479 = vweird.f32 %v978
        %vm1480 = vweird.f32 %v1474
        %vm1481 = vmor %vm1479, %vm1480
        %v1482 = vsel %vm1481, %v1474, %v1478
        %v1483 = vand.u32 2147483647, %v978
        %vm1484 = vcmp.eq.f32.partialorder %v1483, 8.507059e+37
        %v1485 = vand.u32 %v978, 2147483648
        %v1486 = vor.u32 1.1754944e-38, %v1485
        %v1487 = vsel %vm1484, %v1486, %v1482
        %v1488 = vmul.f32 %v210, %v1487
        %v1489 = vrcp.pop %v979
        %v1490 = vmul.f32 %v979, %v1489
        %v1491 = vsub.f32 1.0, %v1490
        %v1492 = vmul.f32 %v1489, %v1491
        %v1493 = vadd.f32 %v1489, %v1492
        %vm1494 = vweird.f32 %v979
        %vm1495 = vweird.f32 %v1489
        %vm1496 = vmor %vm1494, %vm1495
        %v1497 = vsel %vm1496, %v1489, %v1493
        %v1498 = vand.u32 2147483647, %v979
        %vm1499 = vcmp.eq.f32.partialorder %v1498, 8.507059e+37
        %v1500 = vand.u32 %v979, 2147483648
        %v1501 = vor.u32 1.1754944e-38, %v1500
        %v1502 = vsel %vm1499, %v1501, %v1497
        %v1503 = vmul.f32 %v211, %v1502
        %v1504 = vrcp.pop %v980
        %v1505 = vmul.f32 %v980, %v1504
        %v1506 = vsub.f32 1.0, %v1505
        %v1507 = vmul.f32 %v1504, %v1506
        %v1508 = vadd.f32 %v1504, %v1507
        %vm1509 = vweird.f32 %v980
        %vm1510 = vweird.f32 %v1504
        %vm1511 = vmor %vm1509, %vm1510
        %v1512 = vsel %vm1511, %v1504, %v1508
        %v1513 = vand.u32 2147483647, %v980
        %vm1514 = vcmp.eq.f32.partialorder %v1513, 8.507059e+37
        %v1515 = vand.u32 %v980, 2147483648
        %v1516 = vor.u32 1.1754944e-38, %v1515
        %v1517 = vsel %vm1514, %v1516, %v1512
        %v1518 = vmul.f32 %v212, %v1517
        %v1519 = vrcp.pop %v981
        %v1520 = vmul.f32 %v981, %v1519
        %v1521 = vsub.f32 1.0, %v1520
        %v1522 = vmul.f32 %v1519, %v1521
        %v1523 = vadd.f32 %v1519, %v1522
        %vm1524 = vweird.f32 %v981
        %vm1525 = vweird.f32 %v1519
        %vm1526 = vmor %vm1524, %vm1525
        %v1527 = vsel %vm1526, %v1519, %v1523
        %v1528 = vand.u32 2147483647, %v981
        %vm1529 = vcmp.eq.f32.partialorder %v1528, 8.507059e+37
        %v1530 = vand.u32 %v981, 2147483648
        %v1531 = vor.u32 1.1754944e-38, %v1530
        %v1532 = vsel %vm1529, %v1531, %v1527
        %v1533 = vmul.f32 %v213, %v1532
        %v1534 = vrcp.pop %v982
        %v1535 = vmul.f32 %v982, %v1534
        %v1536 = vsub.f32 1.0, %v1535
        %v1537 = vmul.f32 %v1534, %v1536
        %v1538 = vadd.f32 %v1534, %v1537
        %vm1539 = vweird.f32 %v982
        %vm1540 = vweird.f32 %v1534
        %vm1541 = vmor %vm1539, %vm1540
        %v1542 = vsel %vm1541, %v1534, %v1538
        %v1543 = vand.u32 2147483647, %v982
        %vm1544 = vcmp.eq.f32.partialorder %v1543, 8.507059e+37
        %v1545 = vand.u32 %v982, 2147483648
        %v1546 = vor.u32 1.1754944e-38, %v1545
        %v1547 = vsel %vm1544, %v1546, %v1542
        %v1548 = vmul.f32 %v214, %v1547
        %v1549 = vrcp.pop %v983
        %v1550 = vmul.f32 %v983, %v1549
        %v1551 = vsub.f32 1.0, %v1550
        %v1552 = vmul.f32 %v1549, %v1551
        %v1553 = vadd.f32 %v1549, %v1552
        %vm1554 = vweird.f32 %v983
        %vm1555 = vweird.f32 %v1549
        %vm1556 = vmor %vm1554, %vm1555
        %v1557 = vsel %vm1556, %v1549, %v1553
        %v1558 = vand.u32 2147483647, %v983
        %vm1559 = vcmp.eq.f32.partialorder %v1558, 8.507059e+37
        %v1560 = vand.u32 %v983, 2147483648
        %v1561 = vor.u32 1.1754944e-38, %v1560
        %v1562 = vsel %vm1559, %v1561, %v1557
        %v1563 = vmul.f32 %v215, %v1562
        %v1564 = vrcp.pop %v984
        %v1565 = vmul.f32 %v984, %v1564
        %v1566 = vsub.f32 1.0, %v1565
        %v1567 = vmul.f32 %v1564, %v1566
        %v1568 = vadd.f32 %v1564, %v1567
        %vm1569 = vweird.f32 %v984
        %vm1570 = vweird.f32 %v1564
        %vm1571 = vmor %vm1569, %vm1570
        %v1572 = vsel %vm1571, %v1564, %v1568
        %v1573 = vand.u32 2147483647, %v984
        %vm1574 = vcmp.eq.f32.partialorder %v1573, 8.507059e+37
        %v1575 = vand.u32 %v984, 2147483648
        %v1576 = vor.u32 1.1754944e-38, %v1575
        %v1577 = vsel %vm1574, %v1576, %v1572
        %v1578 = vmul.f32 %v216, %v1577
        %v1579 = vrcp.pop %v985
        %v1580 = vmul.f32 %v985, %v1579
        %v1581 = vsub.f32 1.0, %v1580
        %v1582 = vmul.f32 %v1579, %v1581
        %v1583 = vadd.f32 %v1579, %v1582
        %vm1584 = vweird.f32 %v985
        %vm1585 = vweird.f32 %v1579
        %vm1586 = vmor %vm1584, %vm1585
        %v1587 = vsel %vm1586, %v1579, %v1583
        %v1588 = vand.u32 2147483647, %v985
        %vm1589 = vcmp.eq.f32.partialorder %v1588, 8.507059e+37
        %v1590 = vand.u32 %v985, 2147483648
        %v1591 = vor.u32 1.1754944e-38, %v1590
        %v1592 = vsel %vm1589, %v1591, %v1587
        %v1593 = vmul.f32 %v217, %v1592
        %v1594 = vrcp.pop %v986
        %v1595 = vmul.f32 %v986, %v1594
        %v1596 = vsub.f32 1.0, %v1595
        %v1597 = vmul.f32 %v1594, %v1596
        %v1598 = vadd.f32 %v1594, %v1597
        %vm1599 = vweird.f32 %v986
        %vm1600 = vweird.f32 %v1594
        %vm1601 = vmor %vm1599, %vm1600
        %v1602 = vsel %vm1601, %v1594, %v1598
        %v1603 = vand.u32 2147483647, %v986
        %vm1604 = vcmp.eq.f32.partialorder %v1603, 8.507059e+37
        %v1605 = vand.u32 %v986, 2147483648
        %v1606 = vor.u32 1.1754944e-38, %v1605
        %v1607 = vsel %vm1604, %v1606, %v1602
        %v1608 = vmul.f32 %v218, %v1607
        %v1609 = vrcp.pop %v987
        %v1610 = vmul.f32 %v987, %v1609
        %v1611 = vsub.f32 1.0, %v1610
        %v1612 = vmul.f32 %v1609, %v1611
        %v1613 = vadd.f32 %v1609, %v1612
        %vm1614 = vweird.f32 %v987
        %vm1615 = vweird.f32 %v1609
        %vm1616 = vmor %vm1614, %vm1615
        %v1617 = vsel %vm1616, %v1609, %v1613
        %v1618 = vand.u32 2147483647, %v987
        %vm1619 = vcmp.eq.f32.partialorder %v1618, 8.507059e+37
        %v1620 = vand.u32 %v987, 2147483648
        %v1621 = vor.u32 1.1754944e-38, %v1620
        %v1622 = vsel %vm1619, %v1621, %v1617
        %v1623 = vmul.f32 %v219, %v1622
        %v1624 = vrcp.pop %v988
        %v1625 = vmul.f32 %v988, %v1624
        %v1626 = vsub.f32 1.0, %v1625
        %v1627 = vmul.f32 %v1624, %v1626
        %v1628 = vadd.f32 %v1624, %v1627
        %vm1629 = vweird.f32 %v988
        %vm1630 = vweird.f32 %v1624
        %vm1631 = vmor %vm1629, %vm1630
        %v1632 = vsel %vm1631, %v1624, %v1628
        %v1633 = vand.u32 2147483647, %v988
        %vm1634 = vcmp.eq.f32.partialorder %v1633, 8.507059e+37
        %v1635 = vand.u32 %v988, 2147483648
        %v1636 = vor.u32 1.1754944e-38, %v1635
        %v1637 = vsel %vm1634, %v1636, %v1632
        %v1638 = vmul.f32 %v220, %v1637
        %v1639 = vrcp.pop %v989
        %v1640 = vmul.f32 %v989, %v1639
        %v1641 = vsub.f32 1.0, %v1640
        %v1642 = vmul.f32 %v1639, %v1641
        %v1643 = vadd.f32 %v1639, %v1642
        %vm1644 = vweird.f32 %v989
        %vm1645 = vweird.f32 %v1639
        %vm1646 = vmor %vm1644, %vm1645
        %v1647 = vsel %vm1646, %v1639, %v1643
        %v1648 = vand.u32 2147483647, %v989
        %vm1649 = vcmp.eq.f32.partialorder %v1648, 8.507059e+37
        %v1650 = vand.u32 %v989, 2147483648
        %v1651 = vor.u32 1.1754944e-38, %v1650
        %v1652 = vsel %vm1649, %v1651, %v1647
        %v1653 = vmul.f32 %v221, %v1652
        %v1654 = vrcp.pop %v990
        %v1655 = vmul.f32 %v990, %v1654
        %v1656 = vsub.f32 1.0, %v1655
        %v1657 = vmul.f32 %v1654, %v1656
        %v1658 = vadd.f32 %v1654, %v1657
        %vm1659 = vweird.f32 %v990
        %vm1660 = vweird.f32 %v1654
        %vm1661 = vmor %vm1659, %vm1660
        %v1662 = vsel %vm1661, %v1654, %v1658
        %v1663 = vand.u32 2147483647, %v990
        %vm1664 = vcmp.eq.f32.partialorder %v1663, 8.507059e+37
        %v1665 = vand.u32 %v990, 2147483648
        %v1666 = vor.u32 1.1754944e-38, %v1665
        %v1667 = vsel %vm1664, %v1666, %v1662
        %v1668 = vmul.f32 %v222, %v1667
        %v1669 = vrcp.pop %v991
        %v1670 = vmul.f32 %v991, %v1669
        %v1671 = vsub.f32 1.0, %v1670
        %v1672 = vmul.f32 %v1669, %v1671
        %v1673 = vadd.f32 %v1669, %v1672
        %vm1674 = vweird.f32 %v991
        %vm1675 = vweird.f32 %v1669
        %vm1676 = vmor %vm1674, %vm1675
        %v1677 = vsel %vm1676, %v1669, %v1673
        %v1678 = vand.u32 2147483647, %v991
        %vm1679 = vcmp.eq.f32.partialorder %v1678, 8.507059e+37
        %v1680 = vand.u32 %v991, 2147483648
        %v1681 = vor.u32 1.1754944e-38, %v1680
        %v1682 = vsel %vm1679, %v1681, %v1677
        %v1683 = vmul.f32 %v223, %v1682
        %v1684 = vrcp.pop %v992
        %v1685 = vmul.f32 %v992, %v1684
        %v1686 = vsub.f32 1.0, %v1685
        %v1687 = vmul.f32 %v1684, %v1686
        %v1688 = vadd.f32 %v1684, %v1687
        %vm1689 = vweird.f32 %v992
        %vm1690 = vweird.f32 %v1684
        %vm1691 = vmor %vm1689, %vm1690
        %v1692 = vsel %vm1691, %v1684, %v1688
        %v1693 = vand.u32 2147483647, %v992
        %vm1694 = vcmp.eq.f32.partialorder %v1693, 8.507059e+37
        %v1695 = vand.u32 %v992, 2147483648
        %v1696 = vor.u32 1.1754944e-38, %v1695
        %v1697 = vsel %vm1694, %v1696, %v1692
        %v1698 = vmul.f32 %v224, %v1697
        %v1699 = vrcp.pop %v993
        %v1700 = vmul.f32 %v993, %v1699
        %v1701 = vsub.f32 1.0, %v1700
        %v1702 = vmul.f32 %v1699, %v1701
        %v1703 = vadd.f32 %v1699, %v1702
        %vm1704 = vweird.f32 %v993
        %vm1705 = vweird.f32 %v1699
        %vm1706 = vmor %vm1704, %vm1705
        %v1707 = vsel %vm1706, %v1699, %v1703
        %v1708 = vand.u32 2147483647, %v993
        %vm1709 = vcmp.eq.f32.partialorder %v1708, 8.507059e+37
        %v1710 = vand.u32 %v993, 2147483648
        %v1711 = vor.u32 1.1754944e-38, %v1710
        %v1712 = vsel %vm1709, %v1711, %v1707
        %v1713 = vmul.f32 %v225, %v1712
        %1714 = vst [vmem:[%s167] sm:$0xff] %v1008
        %1715 = vst [vmem:[%s167 + $0x8] sm:$0xff] %v1023
        %1716 = vst [vmem:[%s167 + $0x10] sm:$0xff] %v1038
        %1717 = vst [vmem:[%s167 + $0x18] sm:$0xff] %v1053
        %1718 = vst [vmem:[%s167 + $0x20] sm:$0xff] %v1068
        %1719 = vst [vmem:[%s167 + $0x28] sm:$0xff] %v1083
        %1720 = vst [vmem:[%s167 + $0x30] sm:$0xff] %v1098
        %1721 = vst [vmem:[%s167 + $0x38] sm:$0xff] %v1113
        %1722 = vst [vmem:[%s167 + $0x40] sm:$0xff] %v1128
        %1723 = vst [vmem:[%s167 + $0x48] sm:$0xff] %v1143
        %1724 = vst [vmem:[%s167 + $0x50] sm:$0xff] %v1158
        %1725 = vst [vmem:[%s167 + $0x58] sm:$0xff] %v1173
        %1726 = vst [vmem:[%s167 + $0x60] sm:$0xff] %v1188
        %1727 = vst [vmem:[%s167 + $0x68] sm:$0xff] %v1203
        %1728 = vst [vmem:[%s167 + $0x70] sm:$0xff] %v1218
        %1729 = vst [vmem:[%s167 + $0x78] sm:$0xff] %v1233
        %1730 = vst [vmem:[%s167 + $0x80] sm:$0xff] %v1248
        %1731 = vst [vmem:[%s167 + $0x88] sm:$0xff] %v1263
        %1732 = vst [vmem:[%s167 + $0x90] sm:$0xff] %v1278
        %1733 = vst [vmem:[%s167 + $0x98] sm:$0xff] %v1293
        %1734 = vst [vmem:[%s167 + $0xa0] sm:$0xff] %v1308
        %1735 = vst [vmem:[%s167 + $0xa8] sm:$0xff] %v1323
        %1736 = vst [vmem:[%s167 + $0xb0] sm:$0xff] %v1338
        %1737 = vst [vmem:[%s167 + $0xb8] sm:$0xff] %v1353
        %1738 = vst [vmem:[%s167 + $0xc0] sm:$0xff] %v1368
        %1739 = vst [vmem:[%s167 + $0xc8] sm:$0xff] %v1383
        %1740 = vst [vmem:[%s167 + $0xd0] sm:$0xff] %v1398
        %1741 = vst [vmem:[%s167 + $0xd8] sm:$0xff] %v1413
        %1742 = vst [vmem:[%s167 + $0xe0] sm:$0xff] %v1428
        %1743 = vst [vmem:[%s167 + $0xe8] sm:$0xff] %v1443
        %1744 = vst [vmem:[%s167 + $0xf0] sm:$0xff] %v1458
        %1745 = vst [vmem:[%s167 + $0xf8] sm:$0xff] %v1473
        %1746 = vst [vmem:[%s167 + $0x100] sm:$0xff] %v1488
        %1747 = vst [vmem:[%s167 + $0x108] sm:$0xff] %v1503
        %1748 = vst [vmem:[%s167 + $0x110] sm:$0xff] %v1518
        %1749 = vst [vmem:[%s167 + $0x118] sm:$0xff] %v1533
        %1750 = vst [vmem:[%s167 + $0x120] sm:$0xff] %v1548
        %1751 = vst [vmem:[%s167 + $0x128] sm:$0xff] %v1563
        %1752 = vst [vmem:[%s167 + $0x130] sm:$0xff] %v1578
        %1753 = vst [vmem:[%s167 + $0x138] sm:$0xff] %v1593
        %1754 = vst [vmem:[%s167 + $0x140] sm:$0xff] %v1608
        %1755 = vst [vmem:[%s167 + $0x148] sm:$0xff] %v1623
        %1756 = vst [vmem:[%s167 + $0x150] sm:$0xff] %v1638
        %1757 = vst [vmem:[%s167 + $0x158] sm:$0xff] %v1653
        %1758 = vst [vmem:[%s167 + $0x160] sm:$0xff] %v1668
        %1759 = vst [vmem:[%s167 + $0x168] sm:$0xff] %v1683
        %1760 = vst [vmem:[%s167 + $0x170] sm:$0xff] %v1698
        %1761 = vst [vmem:[%s167 + $0x178] sm:$0xff] %v1713
        %v1762 = vpack.c.bf16 %v1008, %v1008
        %v1763 = vpack.c.bf16 %v1023, %v1023
        %v1764 = vpack.c.bf16 %v1038, %v1038
        %v1765 = vpack.c.bf16 %v1053, %v1053
        %v1766 = vpack.c.bf16 %v1068, %v1068
        %v1767 = vpack.c.bf16 %v1083, %v1083
        %v1768 = vpack.c.bf16 %v1098, %v1098
        %v1769 = vpack.c.bf16 %v1113, %v1113
        %v1770 = vpack.c.bf16 %v1128, %v1128
        %v1771 = vpack.c.bf16 %v1143, %v1143
        %v1772 = vpack.c.bf16 %v1158, %v1158
        %v1773 = vpack.c.bf16 %v1173, %v1173
        %v1774 = vpack.c.bf16 %v1188, %v1188
        %v1775 = vpack.c.bf16 %v1203, %v1203
        %v1776 = vpack.c.bf16 %v1218, %v1218
        %v1777 = vpack.c.bf16 %v1233, %v1233
        %v1778 = vpack.c.bf16 %v1248, %v1248
        %v1779 = vpack.c.bf16 %v1263, %v1263
        %v1780 = vpack.c.bf16 %v1278, %v1278
        %v1781 = vpack.c.bf16 %v1293, %v1293
        %v1782 = vpack.c.bf16 %v1308, %v1308
        %v1783 = vpack.c.bf16 %v1323, %v1323
        %v1784 = vpack.c.bf16 %v1338, %v1338
        %v1785 = vpack.c.bf16 %v1353, %v1353
        %v1786 = vpack.c.bf16 %v1368, %v1368
        %v1787 = vpack.c.bf16 %v1383, %v1383
        %v1788 = vpack.c.bf16 %v1398, %v1398
        %v1789 = vpack.c.bf16 %v1413, %v1413
        %v1790 = vpack.c.bf16 %v1428, %v1428
        %v1791 = vpack.c.bf16 %v1443, %v1443
        %v1792 = vpack.c.bf16 %v1458, %v1458
        %v1793 = vpack.c.bf16 %v1473, %v1473
        %v1794 = vpack.c.bf16 %v1488, %v1488
        %v1795 = vpack.c.bf16 %v1503, %v1503
        %v1796 = vpack.c.bf16 %v1518, %v1518
        %v1797 = vpack.c.bf16 %v1533, %v1533
        %v1798 = vpack.c.bf16 %v1548, %v1548
        %v1799 = vpack.c.bf16 %v1563, %v1563
        %v1800 = vpack.c.bf16 %v1578, %v1578
        %v1801 = vpack.c.bf16 %v1593, %v1593
        %v1802 = vpack.c.bf16 %v1608, %v1608
        %v1803 = vpack.c.bf16 %v1623, %v1623
        %v1804 = vpack.c.bf16 %v1638, %v1638
        %v1805 = vpack.c.bf16 %v1653, %v1653
        %v1806 = vpack.c.bf16 %v1668, %v1668
        %v1807 = vpack.c.bf16 %v1683, %v1683
        %v1808 = vpack.c.bf16 %v1698, %v1698
        %v1809 = vpack.c.bf16 %v1713, %v1713
        %1810 = vst [vmem:[%s174] sm:$0xf] %v1762
        %1811 = vst [vmem:[%s174 + $0x4] sm:$0xf] %v1763
        %1812 = vst [vmem:[%s174 + $0x8] sm:$0xf] %v1764
        %1813 = vst [vmem:[%s174 + $0xc] sm:$0xf] %v1765
        %1814 = vst [vmem:[%s174 + $0x10] sm:$0xf] %v1766
        %1815 = vst [vmem:[%s174 + $0x14] sm:$0xf] %v1767
        %1816 = vst [vmem:[%s174 + $0x18] sm:$0xf] %v1768
        %1817 = vst [vmem:[%s174 + $0x1c] sm:$0xf] %v1769
        %1818 = vst [vmem:[%s174 + $0x20] sm:$0xf] %v1770
        %1819 = vst [vmem:[%s174 + $0x24] sm:$0xf] %v1771
        %1820 = vst [vmem:[%s174 + $0x28] sm:$0xf] %v1772
        %1821 = vst [vmem:[%s174 + $0x2c] sm:$0xf] %v1773
        %1822 = vst [vmem:[%s174 + $0x30] sm:$0xf] %v1774
        %1823 = vst [vmem:[%s174 + $0x34] sm:$0xf] %v1775
        %1824 = vst [vmem:[%s174 + $0x38] sm:$0xf] %v1776
        %1825 = vst [vmem:[%s174 + $0x3c] sm:$0xf] %v1777
        %1826 = vst [vmem:[%s174 + $0x40] sm:$0xf] %v1778
        %1827 = vst [vmem:[%s174 + $0x44] sm:$0xf] %v1779
        %1828 = vst [vmem:[%s174 + $0x48] sm:$0xf] %v1780
        %1829 = vst [vmem:[%s174 + $0x4c] sm:$0xf] %v1781
        %1830 = vst [vmem:[%s174 + $0x50] sm:$0xf] %v1782
        %1831 = vst [vmem:[%s174 + $0x54] sm:$0xf] %v1783
        %1832 = vst [vmem:[%s174 + $0x58] sm:$0xf] %v1784
        %1833 = vst [vmem:[%s174 + $0x5c] sm:$0xf] %v1785
        %1834 = vst [vmem:[%s174 + $0x60] sm:$0xf] %v1786
        %1835 = vst [vmem:[%s174 + $0x64] sm:$0xf] %v1787
        %1836 = vst [vmem:[%s174 + $0x68] sm:$0xf] %v1788
        %1837 = vst [vmem:[%s174 + $0x6c] sm:$0xf] %v1789
        %1838 = vst [vmem:[%s174 + $0x70] sm:$0xf] %v1790
        %1839 = vst [vmem:[%s174 + $0x74] sm:$0xf] %v1791
        %1840 = vst [vmem:[%s174 + $0x78] sm:$0xf] %v1792
        %1841 = vst [vmem:[%s174 + $0x7c] sm:$0xf] %v1793
        %1842 = vst [vmem:[%s174 + $0x80] sm:$0xf] %v1794
        %1843 = vst [vmem:[%s174 + $0x84] sm:$0xf] %v1795
        %1844 = vst [vmem:[%s174 + $0x88] sm:$0xf] %v1796
        %1845 = vst [vmem:[%s174 + $0x8c] sm:$0xf] %v1797
        %1846 = vst [vmem:[%s174 + $0x90] sm:$0xf] %v1798
        %1847 = vst [vmem:[%s174 + $0x94] sm:$0xf] %v1799
        %1848 = vst [vmem:[%s174 + $0x98] sm:$0xf] %v1800
        %1849 = vst [vmem:[%s174 + $0x9c] sm:$0xf] %v1801
        %1850 = vst [vmem:[%s174 + $0xa0] sm:$0xf] %v1802
        %1851 = vst [vmem:[%s174 + $0xa4] sm:$0xf] %v1803
        %1852 = vst [vmem:[%s174 + $0xa8] sm:$0xf] %v1804
        %1853 = vst [vmem:[%s174 + $0xac] sm:$0xf] %v1805
        %1854 = vst [vmem:[%s174 + $0xb0] sm:$0xf] %v1806
        %1855 = vst [vmem:[%s174 + $0xb4] sm:$0xf] %v1807
        %1856 = vst [vmem:[%s174 + $0xb8] sm:$0xf] %v1808
        %1857 = vst [vmem:[%s174 + $0xbc] sm:$0xf] %v1809
        %s1858 = sand.u32 %s57, 1
        %s1859 = scalar_lea.sflag [#allocation4], %s1858
        %s1860 = sand.u32 %s57, 1
        %s1861 = smul.addr %s1860, 384
        %s1862 = scalar_lea.vmem [#allocation5], %s1861
        %s1863 = sand.u32 %s83, 1
        %s1864 = scalar_lea.sflag [#allocation7], %s1863
        %s1865 = sand.u32 %s83, 1
        %s1866 = smul.addr %s1865, 192
        %s1867 = scalar_lea.vmem [#allocation6], %s1866
        // Predicated region
        $region29: #{tpu_custom_call.1} parent=23 // pred_check
          %p1868 = pneg %p67
        $region30: #{tpu_custom_call.1} parent=23 // pred_check_branch
          %1870 = sbr.rel (%p1868) target = $region32
        $region31: #{tpu_custom_call.1} parent=23 // pred_region
          %s1871 = smul.u32 48, %s23
          %1873 = vsyncadd %s1859, 0
          %s1874 = smul.addr %s1871, 8
          %s1875 = scalar_lea.hbm %s1, %s1874
          %s1876 = sshll.u32 %s1862, 4
          %s1877 = int_to_ptr.vmem [resolvable:$true] %s1876
          %s1878 = sshll.u32 %s1875, 4
          %s1879 = int_to_ptr.hbm [resolvable:$true] %s1878
          %1884 = dma.vmem_to_hbm [thread:$0]  %s1877, 6144, %s1879, %s1859, 128, 128, 8
        $region32: #{tpu_custom_call.1} parent=23 // pred_fallthru
          _
        // Predicated region
        $region33: #{tpu_custom_call.1} parent=23 // pred_check
          %p1885 = pneg %p93
        $region34: #{tpu_custom_call.1} parent=23 // pred_check_branch
          %1887 = sbr.rel (%p1885) target = $region36
        $region35: #{tpu_custom_call.1} parent=23 // pred_region
          %s1888 = smul.u32 48, %s23
          %1890 = vsyncadd %s1864, 0
          %s1891 = smul.addr %s1888, 4
          %s1892 = scalar_lea.hbm %s2, %s1891
          %s1893 = sshll.u32 %s1867, 4
          %s1894 = int_to_ptr.vmem [resolvable:$true] %s1893
          %s1895 = sshll.u32 %s1892, 4
          %s1896 = int_to_ptr.hbm [resolvable:$true] %s1895
          %1901 = dma.vmem_to_hbm [thread:$0]  %s1894, 3072, %s1896, %s1864, 64, 64, 4
        $region36: #{tpu_custom_call.1} parent=23 // pred_fallthru
          _
      $region24: #{tpu_custom_call.1} parent=5 // pred_fallthru
        _
      %p1902 = scmp.le.s32.totalorder 2, %s18
      // Predicated region
      $region37: #{tpu_custom_call.1} parent=5 // pred_check
        %p1903 = pneg %p1902
      $region38: #{tpu_custom_call.1} parent=5 // pred_check_branch
        %1905 = sbr.rel (%p1903) target = $region40
      $region39: #{tpu_custom_call.1} parent=5 // pred_region
        %s1906 = ssub.s32 %s18, 2
        // Predicated region
        $region41: #{tpu_custom_call.1} parent=39 // pred_check
          %p1907 = pneg %p73
        $region42: #{tpu_custom_call.1} parent=39 // pred_check_branch
          %1909 = sbr.rel (%p1907) target = $region44
        $region43: #{tpu_custom_call.1} parent=39 // pred_region
          %s1910 = sand.u32 %s58, 1
          %s1911 = scalar_lea.sflag [#allocation4], %s1910
          %s1912 = sand.u32 %s58, 1
          %s1913 = smul.addr %s1912, 384
          %s1914 = scalar_lea.vmem [#allocation5], %s1913
          %1916 = dma.done %s1911, 6144
        $region44: #{tpu_custom_call.1} parent=39 // pred_fallthru
          _
        // Predicated region
        $region45: #{tpu_custom_call.1} parent=39 // pred_check
          %p1917 = pneg %p99
        $region46: #{tpu_custom_call.1} parent=39 // pred_check_branch
          %1919 = sbr.rel (%p1917) target = $region48
        $region47: #{tpu_custom_call.1} parent=39 // pred_region
          %s1920 = sand.u32 %s84, 1
          %s1921 = scalar_lea.sflag [#allocation7], %s1920
          %s1922 = sand.u32 %s84, 1
          %s1923 = smul.addr %s1922, 192
          %s1924 = scalar_lea.vmem [#allocation6], %s1923
          %1926 = dma.done %s1921, 3072
        $region48: #{tpu_custom_call.1} parent=39 // pred_fallthru
          _
      $region40: #{tpu_custom_call.1} parent=5 // pred_fallthru
        _
    $region6: #{tpu_custom_call.1} parent=1 // loop_footer
      %s22 = sadd.s32 1, %s18
    $region7: #{tpu_custom_call.1} parent=1 // loop_footer_branch
      %17 = sbr.rel target = $region3
    $region8: #{tpu_custom_call.1} parent=1 // loop_exit
      _
    %1927 = vsyncpa [#allocation3], 1
    %s1928 = scalar_lea.sflag [#allocation3], 1
    %1929 = vsyncpa %s1928, 1
    %1930 = vsyncpa [#allocation4], 1
    %s1931 = scalar_lea.sflag [#allocation4], 1
    %1932 = vsyncpa %s1931, 1
    %1933 = vsyncpa [#allocation7], 1
    %s1934 = scalar_lea.sflag [#allocation7], 1
    %1935 = vsyncpa %s1934, 1

</llo_original>
